<compile_context>
chip_gen: v5e
topology: v5e:2x2
jax: 0.10.0
libtpu: 0.0.40
codegen_flags: <defaults>
</compile_context>

<pallas_src>
import functools
import math

import jax
import jax.numpy as jnp
from jax.experimental import pallas as pl
from jax.experimental.pallas import tpu as pltpu

ROW_TILE_CAP = 512                    # row tile (pixels) for slab kernels
VMEM_LIMIT = 48 * 1024 * 1024         # safe on v5e/v6e (128 MiB) and v7x (64 MiB)


def _row_tile(m, cap=ROW_TILE_CAP):
    """Row tile: multiple of 16 (bf16 sublane packing), capped at ROW_TILE_CAP."""
    return min(cap, ((m + 15) // 16) * 16)


# --------------------------------------------------------------------------
# Activations (traced statically inside kernels, always f32 math)
# --------------------------------------------------------------------------
def _act(y, act):
    if act == "relu":
        return jnp.maximum(y, 0.0)
    if act == "hardswish":
        return y * jnp.clip(y + 3.0, 0.0, 6.0) * (1.0 / 6.0)
    if act == "hardsigmoid":
        return jnp.clip(y * (1.0 / 6.0) + 0.5, 0.0, 1.0)
    if act == "sigmoid":
        return 1.0 / (1.0 + jnp.exp(-y))
    return y


# --------------------------------------------------------------------------
# Pallas kernels
# --------------------------------------------------------------------------
def _matmul_bn_act_kernel(x_ref, w_ref, s_ref, b_ref, o_ref, *, act):
    y = jnp.dot(x_ref[...], w_ref[...], preferred_element_type=jnp.float32)
    y = y * s_ref[...] + b_ref[...]
    o_ref[...] = _act(y, act)


def _matmul_bn_act_res_kernel(x_ref, w_ref, s_ref, b_ref, r_ref, o_ref, *, act):
    y = jnp.dot(x_ref[...], w_ref[...], preferred_element_type=jnp.float32)
    y = y * s_ref[...] + b_ref[...]
    o_ref[...] = _act(y, act) + r_ref[...]   # fused residual add (backbone shortcut)


def matmul_bn_act(x, w, scale, bias, act, residual=None):
    """y = act((x @ w) * scale + bias) [+ residual]; x:(M,K) w:(K,Co)."""
    M, K = x.shape
    Co = w.shape[1]
    tm = _row_tile(M)
    grid = (pl.cdiv(M, tm),)
    xb = x.astype(jnp.bfloat16)               # bf16 MXU inputs, f32 epilogue
    wb = w.astype(jnp.bfloat16)
    in_specs = [
        pl.BlockSpec((tm, K), lambda i: (i, 0)),
        pl.BlockSpec((K, Co), lambda i: (0, 0)),
        pl.BlockSpec((1, Co), lambda i: (0, 0)),
        pl.BlockSpec((1, Co), lambda i: (0, 0)),
    ]
    args = [xb, wb, scale.reshape(1, Co), bias.reshape(1, Co)]
    if residual is None:
        kern = functools.partial(_matmul_bn_act_kernel, act=act)
    else:
        in_specs.append(pl.BlockSpec((tm, Co), lambda i: (i, 0)))
        args.append(residual)
        kern = functools.partial(_matmul_bn_act_res_kernel, act=act)
    return pl.pallas_call(
        kern,
        out_shape=jax.ShapeDtypeStruct((M, Co), jnp.float32),
        grid=grid,
        in_specs=in_specs,
        out_specs=pl.BlockSpec((tm, Co), lambda i: (i, 0)),
        compiler_params=pltpu.CompilerParams(
            dimension_semantics=("parallel",), vmem_limit_bytes=VMEM_LIMIT),
    )(*args)


def _conv_taps_kernel(t_ref, w_ref, s_ref, b_ref, o_ref, acc_ref, *, act, n_taps):
    q = pl.program_id(1)

    @pl.when(q == 0)
    def _():
        acc_ref[...] = jnp.zeros_like(acc_ref)

    acc_ref[...] += jnp.dot(t_ref[...], w_ref[...],
                            preferred_element_type=jnp.float32)

    @pl.when(q == n_taps - 1)
    def _():
        y = acc_ref[...] * s_ref[...] + b_ref[...]
        o_ref[...] = _act(y, act)


def conv_taps_bn_act(taps, w_taps, scale, bias, act):
    """KxK conv as tap accumulation. taps:(KK,M,Ci) bf16; w_taps:(KK,Ci,Co) bf16."""
    KK, M, Ci = taps.shape
    Co = w_taps.shape[2]
    tm = _row_tile(M)
    return pl.pallas_call(
        functools.partial(_conv_taps_kernel, act=act, n_taps=KK),
        out_shape=jax.ShapeDtypeStruct((M, Co), jnp.float32),
        grid=(pl.cdiv(M, tm), KK),
        in_specs=[
            pl.BlockSpec((None, tm, Ci), lambda i, q: (q, i, 0)),
            pl.BlockSpec((None, Ci, Co), lambda i, q: (q, 0, 0)),
            pl.BlockSpec((1, Co), lambda i, q: (0, 0)),
            pl.BlockSpec((1, Co), lambda i, q: (0, 0)),
        ],
        out_specs=pl.BlockSpec((tm, Co), lambda i, q: (i, 0)),
        scratch_shapes=[pltpu.VMEM((tm, Co), jnp.float32)],
        compiler_params=pltpu.CompilerParams(
            dimension_semantics=("parallel", "arbitrary"),
            vmem_limit_bytes=VMEM_LIMIT),
    )(taps, w_taps, scale.reshape(1, Co), bias.reshape(1, Co))


def _depthwise_kernel(t_ref, w_ref, s_ref, b_ref, o_ref, *, act, kk):
    acc = t_ref[0].astype(jnp.float32) * w_ref[0]
    for q in range(1, kk):
        acc = acc + t_ref[q].astype(jnp.float32) * w_ref[q]
    y = acc * s_ref[...] + b_ref[...]
    o_ref[...] = _act(y, act)


def depthwise_bn_act(taps, w, scale, bias, act):
    """taps:(KK,M,C) bf16 shifted windows; w:(KK,C) f32; out:(M,C) f32."""
    KK, M, C = taps.shape
    tm = _row_tile(M)
    return pl.pallas_call(
        functools.partial(_depthwise_kernel, act=act, kk=KK),
        out_shape=jax.ShapeDtypeStruct((M, C), jnp.float32),
        grid=(pl.cdiv(M, tm),),
        in_specs=[
            pl.BlockSpec((KK, tm, C), lambda i: (0, i, 0)),
            pl.BlockSpec((KK, C), lambda i: (0, 0)),
            pl.BlockSpec((1, C), lambda i: (0, 0)),
            pl.BlockSpec((1, C), lambda i: (0, 0)),
        ],
        out_specs=pl.BlockSpec((tm, C), lambda i: (i, 0)),
        compiler_params=pltpu.CompilerParams(
            dimension_semantics=("parallel",), vmem_limit_bytes=VMEM_LIMIT),
    )(taps, w, scale.reshape(1, C), bias.reshape(1, C))


def _gap_kernel(x_ref, o_ref, *, inv_hw, hw, thw):
    i = pl.program_id(0)

    @pl.when(i == 0)
    def _():
        o_ref[...] = jnp.zeros_like(o_ref)

    x = x_ref[...]
    idx = jax.lax.broadcasted_iota(jnp.int32, (1, thw, 1), 1) + i * thw
    x = jnp.where(idx < hw, x, 0.0)              # mask the ragged tail tile
    o_ref[...] = o_ref[...] + jnp.sum(x, axis=1)

    @pl.when(i == pl.num_programs(0) - 1)
    def _():
        o_ref[...] = o_ref[...] * inv_hw


def global_avg_pool(x):
    """x:(N,HW,C) -> (N,C) mean over spatial (SE squeeze), tiled reduction."""
    N, HW, C = x.shape
    thw = _row_tile(HW)
    return pl.pallas_call(
        functools.partial(_gap_kernel, inv_hw=1.0 / HW, hw=HW, thw=thw),
        out_shape=jax.ShapeDtypeStruct((N, C), jnp.float32),
        grid=(pl.cdiv(HW, thw),),
        in_specs=[pl.BlockSpec((N, thw, C), lambda i: (0, i, 0))],
        out_specs=pl.BlockSpec((N, C), lambda i: (0, 0)),
        compiler_params=pltpu.CompilerParams(
            dimension_semantics=("arbitrary",), vmem_limit_bytes=VMEM_LIMIT),
    )(x)


def _se_scale_kernel(x_ref, a_ref, o_ref, *, shortcut):
    x = x_ref[...]
    y = x * a_ref[...]
    if shortcut:
        y = y + x
    o_ref[...] = y


def _se_scale_add_kernel(x_ref, a_ref, e_ref, o_ref, *, shortcut):
    x = x_ref[...]
    y = x * a_ref[...]
    if shortcut:
        y = y + x
    o_ref[...] = y + e_ref[...]          # fused FPN lateral add


def se_scale(x, att, shortcut, extra=None):
    """x:(N,HW,C), att:(N,1,C) -> x*att (+x if RSE shortcut) (+extra), tiled."""
    N, HW, C = x.shape
    thw = _row_tile(HW)
    in_specs = [
        pl.BlockSpec((None, thw, C), lambda n, i: (n, i, 0)),
        pl.BlockSpec((None, 1, C), lambda n, i: (n, 0, 0)),
    ]
    args = [x, att]
    if extra is None:
        kern = functools.partial(_se_scale_kernel, shortcut=shortcut)
    else:
        in_specs.append(pl.BlockSpec((None, thw, C), lambda n, i: (n, i, 0)))
        args.append(extra)
        kern = functools.partial(_se_scale_add_kernel, shortcut=shortcut)
    return pl.pallas_call(
        kern,
        out_shape=jax.ShapeDtypeStruct((N, HW, C), jnp.float32),
        grid=(N, pl.cdiv(HW, thw)),
        in_specs=in_specs,
        out_specs=pl.BlockSpec((None, thw, C), lambda n, i: (n, i, 0)),
        compiler_params=pltpu.CompilerParams(
            dimension_semantics=("parallel", "parallel"),
            vmem_limit_bytes=VMEM_LIMIT),
    )(*args)


# --------------------------------------------------------------------------
# Conv glue (tap extraction / layout only) around the Pallas kernels
# --------------------------------------------------------------------------
def extract_patches(x, k, stride, pad):
    """x:(N,H,W,C) -> (k*k, N, Ho, Wo, C) shifted windows."""
    N, H, W, C = x.shape
    xp = jnp.pad(x, ((0, 0), (pad, pad), (pad, pad), (0, 0)))
    Ho = (H + 2 * pad - k) // stride + 1
    Wo = (W + 2 * pad - k) // stride + 1
    taps = []
    for i in range(k):
        for j in range(k):
            taps.append(xp[:, i:i + stride * Ho:stride, j:j + stride * Wo:stride, :])
    return jnp.stack(taps, axis=0), Ho, Wo


def conv_bn(x, p, stride, pad, act, residual=None):
    """Regular conv (no bias) + folded BN + activation (+ fused residual).
    w:(Co,Ci,K,K) torch layout."""
    w = p["w"]
    Co, Ci, K, _ = w.shape
    N, H, W, C = x.shape
    if K == 1 and stride == 1 and pad == 0:
        X = x.reshape(N * H * W, C)
        Wm = w.reshape(Co, Ci).T
        res = None if residual is None else residual.reshape(N * H * W, Co)
        y = matmul_bn_act(X, Wm, p["scale"], p["bias"], act, residual=res)
        return y.reshape(N, H, W, Co)
    assert residual is None
    # TODO(synk): shifted taps are still materialized in HBM; a halo BlockSpec /
    # manual-DMA version would read the padded activation directly.
    taps, Ho, Wo = extract_patches(x.astype(jnp.bfloat16), K, stride, pad)
    T = taps.reshape(K * K, N * Ho * Wo, Ci)
    Wt = jnp.transpose(w, (2, 3, 1, 0)).reshape(K * K, Ci, Co).astype(jnp.bfloat16)
    y = conv_taps_bn_act(T, Wt, p["scale"], p["bias"], act)
    return y.reshape(N, Ho, Wo, Co)


def dwconv_bn(x, p, stride, pad, act):
    """Depthwise conv (groups=C) + folded BN + activation. w:(C,1,K,K)."""
    w = p["w"]
    C, _, K, _ = w.shape
    N = x.shape[0]
    taps, Ho, Wo = extract_patches(x.astype(jnp.bfloat16), K, stride, pad)
    T = taps.reshape(K * K, N * Ho * Wo, C)
    Wd = jnp.transpose(w.reshape(C, K * K), (1, 0))  # (KK, C)
    y = depthwise_bn_act(T, Wd, p["scale"], p["bias"], act)
    return y.reshape(N, Ho, Wo, C)


def se_module(x, p, shortcut, extra=None):
    """SEModule: GAP -> 1x1 relu -> 1x1 hardsigmoid -> scale (+ RSE shortcut)
    (+ optional fused elementwise add used by the FPN lateral connections)."""
    N, H, W, C = x.shape
    x3 = x.reshape(N, H * W, C)
    pooled = global_avg_pool(x3)  # (N, C)
    mid = matmul_bn_act(pooled, p["w1"], jnp.ones((p["w1"].shape[1],), jnp.float32),
                        p["b1"], "relu")
    att = matmul_bn_act(mid, p["w2"], jnp.ones((C,), jnp.float32),
                        p["b2"], "hardsigmoid")
    e3 = None if extra is None else extra.reshape(N, H * W, C)
    y = se_scale(x3, att.reshape(N, 1, C), shortcut, extra=e3)
    return y.reshape(N, H, W, C)


def rse_layer(x, p, shortcut=True, extra=None):
    """RSELayer: plain conv (no BN/act, no bias) followed by residual SE block."""
    w = p["w"]
    co, _, k, _ = w.shape
    conv_p = {"w": w, "scale": jnp.ones((co,), jnp.float32),
              "bias": jnp.zeros((co,), jnp.float32)}
    y = conv_bn(x, conv_p, stride=1, pad=k // 2, act="none")
    return se_module(y, p["se"], shortcut, extra=extra)


def upsample_nearest(x, factor):
    x = jnp.repeat(x, factor, axis=1)
    return jnp.repeat(x, factor, axis=2)


def deconv2x2(x, w, b, bn_scale, bn_bias, act):
    """ConvTranspose2d(kernel=2, stride=2) as matmul + pixel shuffle.
    w:(Cin,Cout,2,2) torch layout; optional folded BN then activation."""
    N, H, W, Cin = x.shape
    Cout = w.shape[1]
    Wm = jnp.transpose(w, (0, 2, 3, 1)).reshape(Cin, 4 * Cout)
    if bn_scale is None:
        s = jnp.ones((Cout,), jnp.float32)
        t = b
    else:
        s = bn_scale
        t = b * bn_scale + bn_bias
    y = matmul_bn_act(x.reshape(N * H * W, Cin), Wm, jnp.tile(s, 4), jnp.tile(t, 4), act)
    y = y.reshape(N, H, W, 2, 2, Cout)
    y = jnp.transpose(y, (0, 1, 3, 2, 4, 5)).reshape(N, 2 * H, 2 * W, Cout)
    return y


# --------------------------------------------------------------------------
# Deterministic parameter construction (synthetic; no checkpoint load)
# --------------------------------------------------------------------------
class ParamRNG:
    def __init__(self, seed):
        self._key = jax.random.PRNGKey(seed)

    def normal(self, shape, std=1.0):
        self._key, sub = jax.random.split(self._key)
        return std * jax.random.normal(sub, shape, jnp.float32)


def make_divisible(v, divisor=8, min_value=None):
    if min_value is None:
        min_value = divisor
    new_v = max(min_value, int(v + divisor / 2) // divisor * divisor)
    if new_v < 0.9 * v:
        new_v += divisor
    return new_v


def conv_bn_params(rng, cin, cout, k, depthwise=False):
    fan_in = (k * k) if depthwise else (cin * k * k)
    wshape = (cout, 1, k, k) if depthwise else (cout, cin, k, k)
    w = rng.normal(wshape, 1.0 / math.sqrt(fan_in))
    gamma = 1.0 + rng.normal((cout,), 0.1)
    beta = rng.normal((cout,), 0.1)
    mean = rng.normal((cout,), 0.05)
    var = jnp.ones((cout,), jnp.float32)
    s = gamma / jnp.sqrt(var + 1e-5)
    b = beta - mean * s
    return {"w": w, "scale": s, "bias": b}


def se_params(rng, c):
    mid = max(1, c // 4)
    return {
        "w1": rng.normal((c, mid), 1.0 / math.sqrt(c)),    # torch conv1 (mid,c,1,1) transposed
        "b1": rng.normal((mid,), 0.1),
        "w2": rng.normal((mid, c), 1.0 / math.sqrt(mid)),  # torch conv2 (c,mid,1,1) transposed
        "b2": rng.normal((c,), 0.1),
    }


# MobileNetV3-large config: (kernel, exp, out, use_se, act, stride). disable_se=True.
MV3_LARGE_CFG = [
    (3, 16, 16, False, "relu", 1),
    (3, 64, 24, False, "relu", 2),
    (3, 72, 24, False, "relu", 1),
    (5, 72, 40, True, "relu", 2),
    (5, 120, 40, True, "relu", 1),
    (5, 120, 40, True, "relu", 1),
    (3, 240, 80, False, "hardswish", 2),
    (3, 200, 80, False, "hardswish", 1),
    (3, 184, 80, False, "hardswish", 1),
    (3, 184, 80, False, "hardswish", 1),
    (3, 480, 112, True, "hardswish", 1),
    (3, 672, 112, True, "hardswish", 1),
    (5, 672, 160, True, "hardswish", 2),
    (5, 672, 160, True, "hardswish", 1),
    (5, 960, 160, True, "hardswish", 1),
]
MV3_SCALE = 0.5


def build_backbone(rng, scale=MV3_SCALE):
    params = {}
    inplanes = make_divisible(16 * scale)
    params["conv1"] = conv_bn_params(rng, 3, inplanes, 3)
    blocks = []
    out_channels = []
    for idx, (k, exp, c, _se, act, s) in enumerate(MV3_LARGE_CFG):
        if s == 2 and idx > 2:
            out_channels.append(inplanes)
        mid = make_divisible(scale * exp)
        out = make_divisible(scale * c)
        blocks.append({
            "expand": conv_bn_params(rng, inplanes, mid, 1),
            "dw": conv_bn_params(rng, mid, mid, k, depthwise=True),
            "linear": conv_bn_params(rng, mid, out, 1),
            "k": k, "stride": s, "act": act,
            "shortcut": (s == 1 and inplanes == out),
        })
        inplanes = out
    params["blocks"] = blocks
    params["conv2"] = conv_bn_params(rng, inplanes, make_divisible(scale * 960), 1)
    out_channels.append(make_divisible(scale * 960))
    return params, out_channels  # out_channels == [16, 24, 56, 480]


def backbone_forward(params, x):
    x = conv_bn(x, params["conv1"], stride=2, pad=1, act="hardswish")
    feats = []
    for idx, blk in enumerate(params["blocks"]):
        if blk["stride"] == 2 and idx > 2:
            feats.append(x)  # stage boundary feature map
        inp = x
        y = conv_bn(x, blk["expand"], stride=1, pad=0, act=blk["act"])
        y = dwconv_bn(y, blk["dw"], stride=blk["stride"], pad=blk["k"] // 2, act=blk["act"])
        # disable_se=True: SE inside ResidualUnit is skipped.
        # Residual shortcut is fused into the linear 1x1 conv epilogue.
        y = conv_bn(y, blk["linear"], stride=1, pad=0, act="none",
                    residual=inp if blk["shortcut"] else None)
        x = y
    x = conv_bn(x, params["conv2"], stride=1, pad=0, act="hardswish")
    feats.append(x)
    return feats  # strides 4, 8, 16, 32


def build_neck(rng, in_ch_list, out_ch=96):
    ins, inp = [], []
    for c in in_ch_list:
        ins.append({"w": rng.normal((out_ch, c, 1, 1), 1.0 / math.sqrt(c)),
                    "se": se_params(rng, out_ch)})
        inp.append({"w": rng.normal((out_ch // 4, out_ch, 3, 3), 1.0 / math.sqrt(out_ch * 9)),
                    "se": se_params(rng, out_ch // 4)})
    return {"ins": ins, "inp": inp}


def neck_forward(params, feats, shortcut=True):
    c2, c3, c4, c5 = feats
    in5 = rse_layer(c5, params["ins"][3], shortcut)
    # FPN lateral adds are fused into the se_scale epilogue of each RSE layer.
    out4 = rse_layer(c4, params["ins"][2], shortcut, extra=upsample_nearest(in5, 2))
    out3 = rse_layer(c3, params["ins"][1], shortcut, extra=upsample_nearest(out4, 2))
    out2 = rse_layer(c2, params["ins"][0], shortcut, extra=upsample_nearest(out3, 2))
    p5 = rse_layer(in5, params["inp"][3], shortcut)
    p4 = rse_layer(out4, params["inp"][2], shortcut)
    p3 = rse_layer(out3, params["inp"][1], shortcut)
    p2 = rse_layer(out2, params["inp"][0], shortcut)
    p5 = upsample_nearest(p5, 8)
    p4 = upsample_nearest(p4, 4)
    p3 = upsample_nearest(p3, 2)
    return jnp.concatenate([p5, p4, p3, p2], axis=-1)  # (N, H/4, W/4, 96)


def build_head(rng, in_ch=96):
    mid = in_ch // 4
    p = {"conv1": conv_bn_params(rng, in_ch, mid, 3)}
    p["w2"] = rng.normal((mid, mid, 2, 2), 1.0 / math.sqrt(mid * 4))
    p["b2"] = rng.normal((mid,), 0.1)
    gamma = 1.0 + rng.normal((mid,), 0.1)
    beta = rng.normal((mid,), 0.1)
    mean = rng.normal((mid,), 0.05)
    s2 = gamma / jnp.sqrt(jnp.ones((mid,), jnp.float32) + 1e-5)
    p["s2"] = s2
    p["t2"] = beta - mean * s2
    p["w3"] = rng.normal((mid, 1, 2, 2), 1.0 / math.sqrt(mid * 4))
    p["b3"] = rng.normal((1,), 0.1)
    return p


def head_forward(p, x):
    y = conv_bn(x, p["conv1"], stride=1, pad=1, act="relu")
    y = deconv2x2(y, p["w2"], p["b2"], p["s2"], p["t2"], "relu")
    y = deconv2x2(y, p["w3"], p["b3"], None, None, "sigmoid")
    # TODO(synk): training-mode DBHead branch (threshold map + differentiable
    # binarization step with k=50) omitted; eval forward returns the shrink map only.
    return jnp.transpose(y, (0, 3, 1, 2))  # back to NCHW (N, 1, H, W)


def dbnet_forward(backbone_p, neck_p, head_p, x_nchw):
    x = jnp.transpose(x_nchw, (0, 2, 3, 1)).astype(jnp.float32)  # NCHW -> NHWC
    feats = backbone_forward(backbone_p, x)
    fused = neck_forward(neck_p, feats, shortcut=True)
    return head_forward(head_p, fused)


if __name__ == "__main__":
    prng = ParamRNG(42)
    backbone_p, backbone_channels = build_backbone(prng)
    neck_p = build_neck(prng, backbone_channels, out_ch=96)
    head_p = build_head(prng, in_ch=96)

    key = jax.random.PRNGKey(0)
    x = jax.random.normal(key, (2, 3, 32, 32), jnp.float32)  # NCHW like PyTorch

    out = dbnet_forward(backbone_p, neck_p, head_p, x)
    out = jax.block_until_ready(out)

    assert out.shape == (2, 1, 32, 32), out.shape
    assert bool(jnp.all(jnp.isfinite(out)))
    assert bool(jnp.all((out >= 0.0) & (out <= 1.0)))  # sigmoid probability map
    print("KERNEL_OK")
</pallas_src>

<mosaic_0001>
module attributes {stable_mosaic.version = 11 : i64} {
  func.func @_conv_taps_kernel(%arg0: i32, %arg1: i32, %arg2: memref<1x512x3xbf16, #tpu.memory_space<vmem>>, %arg3: memref<1x3x8xbf16, #tpu.memory_space<vmem>>, %arg4: memref<1x8xf32, #tpu.memory_space<vmem>>, %arg5: memref<1x8xf32, #tpu.memory_space<vmem>>, %arg6: memref<512x8xf32, #tpu.memory_space<vmem>>, %arg7: memref<512x8xf32, #tpu.memory_space<vmem>>) attributes {dimension_semantics = [#tpu.dimension_semantics<parallel>, #tpu.dimension_semantics<arbitrary>], iteration_bounds = array<i64: 1, 9>, scalar_prefetch = 0 : i64, scratch_operands = 1 : i64, tpu.core_type = #tpu.core_type<tc>, window_params = [{transform_indices = @transform_0, window_bounds = array<i64: 1, 512, 3>}, {transform_indices = @transform_1, window_bounds = array<i64: 1, 3, 8>}, {pipeline_mode = #tpu.pipeline_mode<synchronous>, transform_indices = @transform_2, window_bounds = array<i64: 1, 8>}, {pipeline_mode = #tpu.pipeline_mode<synchronous>, transform_indices = @transform_3, window_bounds = array<i64: 1, 8>}, {transform_indices = @transform_4, window_bounds = array<i64: 512, 8>}]} {
    %c0_i32 = arith.constant 0 : i32
    %0 = arith.cmpi eq, %arg1, %c0_i32 : i32
    %1 = arith.extui %0 : i1 to i32
    %c0_i32_0 = arith.constant 0 : i32
    %2 = arith.cmpi ne, %1, %c0_i32_0 : i32
    scf.if %2 {
      %cst_11 = arith.constant 0.000000e+00 : f32
      %14 = vector.broadcast %cst_11 : f32 to vector<512x8xf32>
      %c0_12 = arith.constant 0 : index
      %c0_13 = arith.constant 0 : index
      %15 = vector.load %arg7[%c0_12, %c0_13] : memref<512x8xf32, #tpu.memory_space<vmem>>, vector<512x8xf32>
      tpu.vector_store %arg7[%c0_12, %c0_13], %14 {strides = array<i32>} : memref<512x8xf32, #tpu.memory_space<vmem>>, vector<512x8xf32>,
    } else {
    }
    %c0 = arith.constant 0 : index
    %c0_1 = arith.constant 0 : index
    %3 = vector.load %arg7[%c0, %c0_1] : memref<512x8xf32, #tpu.memory_space<vmem>>, vector<512x8xf32>
    %c0_2 = arith.constant 0 : index
    %c0_3 = arith.constant 0 : index
    %c0_4 = arith.constant 0 : index
    %4 = vector.load %arg2[%c0_2, %c0_3, %c0_4] : memref<1x512x3xbf16, #tpu.memory_space<vmem>>, vector<1x512x3xbf16>
    %5 = vector.shape_cast %4 : vector<1x512x3xbf16> to vector<512x3xbf16>
    %c0_5 = arith.constant 0 : index
    %c0_6 = arith.constant 0 : index
    %c0_7 = arith.constant 0 : index
    %6 = vector.load %arg3[%c0_5, %c0_6, %c0_7] : memref<1x3x8xbf16, #tpu.memory_space<vmem>>, vector<1x3x8xbf16>
    %7 = vector.shape_cast %6 : vector<1x3x8xbf16> to vector<3x8xbf16>
    %cst = arith.constant dense<0.000000e+00> : vector<512x8xf32>
    %8 = tpu.matmul %5, %7, %cst {dimension_numbers = #tpu.dot_dimension_numbers<[1], [0], [0], [1], [0, 0, 1, 1], [], []>} : vector<512x3xbf16>, vector<3x8xbf16>, vector<512x8xf32> -> vector<512x8xf32>
    %9 = arith.addf %3, %8 : vector<512x8xf32>
    %c0_8 = arith.constant 0 : index
    %c0_9 = arith.constant 0 : index
    %10 = vector.load %arg7[%c0_8, %c0_9] : memref<512x8xf32, #tpu.memory_space<vmem>>, vector<512x8xf32>
    tpu.vector_store %arg7[%c0_8, %c0_9], %9 {strides = array<i32>} : memref<512x8xf32, #tpu.memory_space<vmem>>, vector<512x8xf32>,
    %c8_i32 = arith.constant 8 : i32
    %11 = arith.cmpi eq, %arg1, %c8_i32 : i32
    %12 = arith.extui %11 : i1 to i32
    %c0_i32_10 = arith.constant 0 : i32
    %13 = arith.cmpi ne, %12, %c0_i32_10 : i32
    scf.if %13 {
      %c0_11 = arith.constant 0 : index
      %c0_12 = arith.constant 0 : index
      %14 = vector.load %arg7[%c0_11, %c0_12] : memref<512x8xf32, #tpu.memory_space<vmem>>, vector<512x8xf32>
      %c0_13 = arith.constant 0 : index
      %c0_14 = arith.constant 0 : index
      %15 = vector.load %arg4[%c0_13, %c0_14] : memref<1x8xf32, #tpu.memory_space<vmem>>, vector<1x8xf32>
      %16 = vector.broadcast %15 : vector<1x8xf32> to vector<512x8xf32>
      %17 = arith.mulf %14, %16 : vector<512x8xf32>
      %c0_15 = arith.constant 0 : index
      %c0_16 = arith.constant 0 : index
      %18 = vector.load %arg5[%c0_15, %c0_16] : memref<1x8xf32, #tpu.memory_space<vmem>>, vector<1x8xf32>
      %19 = vector.broadcast %18 : vector<1x8xf32> to vector<512x8xf32>
      %20 = arith.addf %17, %19 : vector<512x8xf32>
      %cst_17 = arith.constant 3.000000e+00 : f32
      %21 = vector.broadcast %cst_17 : f32 to vector<512x8xf32>
      %22 = arith.addf %20, %21 : vector<512x8xf32>
      %cst_18 = arith.constant 0.000000e+00 : f32
      %cst_19 = arith.constant 6.000000e+00 : f32
      %23 = vector.broadcast %cst_18 : f32 to vector<512x8xf32>
      %24 = arith.maximumf %23, %22 : vector<512x8xf32>
      %25 = vector.broadcast %cst_19 : f32 to vector<512x8xf32>
      %26 = arith.minimumf %25, %24 : vector<512x8xf32>
      %27 = arith.mulf %20, %26 : vector<512x8xf32>
      %cst_20 = arith.constant 0.166666672 : f32
      %28 = vector.broadcast %cst_20 : f32 to vector<512x8xf32>
      %29 = arith.mulf %27, %28 : vector<512x8xf32>
      %c0_21 = arith.constant 0 : index
      %c0_22 = arith.constant 0 : index
      %30 = vector.load %arg6[%c0_21, %c0_22] : memref<512x8xf32, #tpu.memory_space<vmem>>, vector<512x8xf32>
      tpu.vector_store %arg6[%c0_21, %c0_22], %29 {strides = array<i32>} : memref<512x8xf32, #tpu.memory_space<vmem>>, vector<512x8xf32>,
    } else {
    }
    return
  }
  func.func @transform_0(%arg0: i32, %arg1: i32) -> (i32, i32, i32) {
    %c0_i32 = arith.constant 0 : i32
    %c0_i32_0 = arith.constant 0 : i32
    return %arg1, %arg0, %c0_i32 : i32, i32, i32
  }
  func.func @transform_1(%arg0: i32, %arg1: i32) -> (i32, i32, i32) {
    %c0_i32 = arith.constant 0 : i32
    %c0_i32_0 = arith.constant 0 : i32
    %c0_i32_1 = arith.constant 0 : i32
    return %arg1, %c0_i32, %c0_i32_0 : i32, i32, i32
  }
  func.func @transform_2(%arg0: i32, %arg1: i32) -> (i32, i32) {
    %c0_i32 = arith.constant 0 : i32
    %c0_i32_0 = arith.constant 0 : i32
    %c0_i32_1 = arith.constant 0 : i32
    return %c0_i32, %c0_i32_0 : i32, i32
  }
  func.func @transform_3(%arg0: i32, %arg1: i32) -> (i32, i32) {
    %c0_i32 = arith.constant 0 : i32
    %c0_i32_0 = arith.constant 0 : i32
    %c0_i32_1 = arith.constant 0 : i32
    return %c0_i32, %c0_i32_0 : i32, i32
  }
  func.func @transform_4(%arg0: i32, %arg1: i32) -> (i32, i32) {
    %c0_i32 = arith.constant 0 : i32
    %c0_i32_0 = arith.constant 0 : i32
    return %arg0, %c0_i32 : i32, i32
  }
}

</mosaic_0001>

<llo_original>
// kernel: tpu_custom_call.1
$region0: #{tpu_custom_call.1}
  #allocation0 [shape = 'u32[]', space=smem, size = 0x4, offset = 0x4, fixed_abs, tag = 'smem constant byte address 0x4 - core index']
  #allocation1 [shape = 'u32[72,128]{1,0:T(1,128)}', space=vmem, size = 0x9000, scoped, tag = 'internal scratch']
  #allocation2 [shape = 'f32[512,8]{1,0:T(8,128)}', space=vmem, size = 0x40000, scoped, tag = 'scratch operand']
  %s0 = inlined_call_operand.vmem [shape: bf16[9,512,3], index: 0, kind: input, shape index: {}]
  %s1 = inlined_call_operand.vmem [shape: bf16[9,3,8], index: 1, kind: input, shape index: {}]
  %s2 = inlined_call_operand.vmem [shape: f32[1,8], index: 2, kind: input, shape index: {}]
  %s3 = inlined_call_operand.vmem [shape: f32[1,8], index: 3, kind: input, shape index: {}]
  %s4 = inlined_call_operand.vmem [shape: f32[512,8], index: 4, kind: output, shape index: {}]
  %s5 = sld [smem:[#allocation0]]
  $region57: #{tpu_custom_call.1} parent=0
    _
  %s7 = ssub.s32 1, %s5
  %s8 = scalar_select 0, %s7, %s5
  loop: start=0, step=1, limit=11
  $region2: #{tpu_custom_call.1} parent=0 // loop_pre_header
    _
  $region3: #{tpu_custom_call.1} parent=0 // loop_header
    %s10 = sphi 0, %s14
    %p11 = scmp.ge.s32.totalorder %s10, 11
    %s17 = sphi 0, %s29
    %s18 = sphi 0, %s25
    %s19 = sphi 0, %s17
    %s20 = sphi 0, %s18
    %s21 = sphi 0, %s19
    %s22 = sphi 0, %s20
    %s34 = sphi 0, %s36
    %s37 = sphi 0, %s34
    %s38 = sphi 0, %s37
    %s54 = sphi 0, %s38
    %s60 = sphi 0, %s62
    %s63 = sphi 0, %s60
    %s64 = sphi 0, %s63
    %s80 = sphi 0, %s64
    %s84 = sphi 0, %s84
    %s86 = sphi 0, %s84
    %s87 = sphi 0, %s86
    %s101 = sphi 0, %s87
    %s105 = sphi 0, %s105
    %s107 = sphi 0, %s105
    %s108 = sphi 0, %s107
    %s122 = sphi 0, %s108
    %s128 = sphi 0, %s130
    %s131 = sphi 0, %s128
    %s132 = sphi 0, %s131
    %s148 = sphi 0, %s132
  $region4: #{tpu_custom_call.1} parent=0 // loop_header_branch
    %13 = sbr.rel (%p11) target = $region8
  $region5: #{tpu_custom_call.1} parent=0 // loop_body
    %s15 = ssub.s32 %s10, 1
    %s16 = ssub.s32 %s10, 2
    %s23 = sadd.s32 1, %s18
    %p24 = scmp.ge.s32.totalorder %s23, 9
    %s25 = scalar_select %p24, 0, %s23
    %s26 = sadd.s32 1, %s17
    %s27 = scalar_select %p24, %s26, %s17
    %p28 = scmp.ge.s32.totalorder %s27, 1
    %s29 = scalar_select %p28, 0, %s27
    %s30 = ssub.s32 %s18, %s25
    %s31 = ssub.s32 %s17, %s29
    %s32 = sor.u32 %s30, %s31
    %p33 = scmp.eq.s32.totalorder %s32, 0
    %s35 = sadd.s32 %s34, 1
    %s36 = scalar_select %p33, %s34, %s35
    %p39 = pneg %p33
    %p40 = scmp.eq.s32.totalorder %s10, 8
    %p41 = por %p39, %p40
    %p42 = scmp.ne.s32.totalorder %s34, %s37
    %p43 = scmp.eq.s32.totalorder %s10, 0
    %p44 = por %p42, %p43
    %p45 = scmp.ne.s32.totalorder %s34, %s37
    %p46 = scmp.eq.s32.totalorder %s15, 8
    %p47 = por %p45, %p46
    %p48 = scmp.ne.s32.totalorder %s37, %s38
    %p49 = scmp.eq.s32.totalorder %s15, 0
    %p50 = por %p48, %p49
    %p51 = scmp.ne.s32.totalorder %s37, %s38
    %p52 = scmp.eq.s32.totalorder %s16, 8
    %p53 = por %p51, %p52
    %p55 = scmp.ne.s32.totalorder %s38, %s54
    %p56 = scmp.eq.s32.totalorder %s16, 0
    %p57 = por %p55, %p56
    %s58 = ssub.s32 %s18, %s25
    %p59 = scmp.eq.s32.totalorder %s58, 0
    %s61 = sadd.s32 %s60, 1
    %s62 = scalar_select %p59, %s60, %s61
    %p65 = pneg %p59
    %p66 = scmp.eq.s32.totalorder %s10, 8
    %p67 = por %p65, %p66
    %p68 = scmp.ne.s32.totalorder %s60, %s63
    %p69 = scmp.eq.s32.totalorder %s10, 0
    %p70 = por %p68, %p69
    %p71 = scmp.ne.s32.totalorder %s60, %s63
    %p72 = scmp.eq.s32.totalorder %s15, 8
    %p73 = por %p71, %p72
    %p74 = scmp.ne.s32.totalorder %s63, %s64
    %p75 = scmp.eq.s32.totalorder %s15, 0
    %p76 = por %p74, %p75
    %p77 = scmp.ne.s32.totalorder %s63, %s64
    %p78 = scmp.eq.s32.totalorder %s16, 8
    %p79 = por %p77, %p78
    %p81 = scmp.ne.s32.totalorder %s64, %s80
    %p82 = scmp.eq.s32.totalorder %s16, 0
    %p83 = por %p81, %p82
    %s85 = sadd.s32 %s84, 1
    %p88 = scmp.eq.s32.totalorder %s10, 8
    %p89 = scmp.ne.s32.totalorder %s84, %s86
    %p90 = scmp.eq.s32.totalorder %s10, 0
    %p91 = por %p89, %p90
    %p92 = scmp.ne.s32.totalorder %s84, %s86
    %p93 = scmp.eq.s32.totalorder %s15, 8
    %p94 = por %p92, %p93
    %p95 = scmp.ne.s32.totalorder %s86, %s87
    %p96 = scmp.eq.s32.totalorder %s15, 0
    %p97 = por %p95, %p96
    %p98 = scmp.ne.s32.totalorder %s86, %s87
    %p99 = scmp.eq.s32.totalorder %s16, 8
    %p100 = por %p98, %p99
    %p102 = scmp.ne.s32.totalorder %s87, %s101
    %p103 = scmp.eq.s32.totalorder %s16, 0
    %p104 = por %p102, %p103
    %s106 = sadd.s32 %s105, 1
    %p109 = scmp.eq.s32.totalorder %s10, 8
    %p110 = scmp.ne.s32.totalorder %s105, %s107
    %p111 = scmp.eq.s32.totalorder %s10, 0
    %p112 = por %p110, %p111
    %p113 = scmp.ne.s32.totalorder %s105, %s107
    %p114 = scmp.eq.s32.totalorder %s15, 8
    %p115 = por %p113, %p114
    %p116 = scmp.ne.s32.totalorder %s107, %s108
    %p117 = scmp.eq.s32.totalorder %s15, 0
    %p118 = por %p116, %p117
    %p119 = scmp.ne.s32.totalorder %s107, %s108
    %p120 = scmp.eq.s32.totalorder %s16, 8
    %p121 = por %p119, %p120
    %p123 = scmp.ne.s32.totalorder %s108, %s122
    %p124 = scmp.eq.s32.totalorder %s16, 0
    %p125 = por %p123, %p124
    %s126 = ssub.s32 %s17, %s29
    %p127 = scmp.eq.s32.totalorder %s126, 0
    %s129 = sadd.s32 %s128, 1
    %s130 = scalar_select %p127, %s128, %s129
    %p133 = pneg %p127
    %p134 = scmp.eq.s32.totalorder %s10, 8
    %p135 = por %p133, %p134
    %p136 = scmp.ne.s32.totalorder %s128, %s131
    %p137 = scmp.eq.s32.totalorder %s10, 0
    %p138 = por %p136, %p137
    %p139 = scmp.ne.s32.totalorder %s128, %s131
    %p140 = scmp.eq.s32.totalorder %s15, 8
    %p141 = por %p139, %p140
    %p142 = scmp.ne.s32.totalorder %s131, %s132
    %p143 = scmp.eq.s32.totalorder %s15, 0
    %p144 = por %p142, %p143
    %p145 = scmp.ne.s32.totalorder %s131, %s132
    %p146 = scmp.eq.s32.totalorder %s16, 8
    %p147 = por %p145, %p146
    %p149 = scmp.ne.s32.totalorder %s132, %s148
    %p150 = scmp.eq.s32.totalorder %s16, 0
    %p151 = por %p149, %p150
    %p152 = scmp.le.s32.totalorder 1, %s10
    %p153 = scmp.lt.s32.totalorder %s10, 10
    %p154 = pnand %p152, %p153
    %p155 = pneg %p154
    // Predicated region
    $region9: #{tpu_custom_call.1} parent=5 // pred_check
      _
    $region10: #{tpu_custom_call.1} parent=5 // pred_check_branch
      %157 = sbr.rel (%p154) target = $region12
    $region11: #{tpu_custom_call.1} parent=5 // pred_region
      %s158 = ssub.s32 %s10, 1
      // Predicated region
      $region13: #{tpu_custom_call.1} parent=11 // pred_check
        %p159 = pneg %p97
      $region14: #{tpu_custom_call.1} parent=11 // pred_check_branch
        %161 = sbr.rel (%p159) target = $region16
      $region15: #{tpu_custom_call.1} parent=11 // pred_region
        _
      $region16: #{tpu_custom_call.1} parent=11 // pred_fallthru
        _
      // Predicated region
      $region17: #{tpu_custom_call.1} parent=11 // pred_check
        %p162 = pneg %p118
      $region18: #{tpu_custom_call.1} parent=11 // pred_check_branch
        %164 = sbr.rel (%p162) target = $region20
      $region19: #{tpu_custom_call.1} parent=11 // pred_region
        _
      $region20: #{tpu_custom_call.1} parent=11 // pred_fallthru
        _
    $region12: #{tpu_custom_call.1} parent=5 // pred_fallthru
      _
    %p165 = scmp.lt.s32.totalorder %s10, 9
    // Predicated region
    $region21: #{tpu_custom_call.1} parent=5 // pred_check
      %p166 = pneg %p165
    $region22: #{tpu_custom_call.1} parent=5 // pred_check_branch
      %168 = sbr.rel (%p166) target = $region24
    $region23: #{tpu_custom_call.1} parent=5 // pred_region
      // Predicated region
      $region25: #{tpu_custom_call.1} parent=23 // pred_check
        %p169 = pneg %p44
      $region26: #{tpu_custom_call.1} parent=23 // pred_check_branch
        %171 = sbr.rel (%p169) target = $region28
      $region27: #{tpu_custom_call.1} parent=23 // pred_region
        %s172 = smul.u32 64, %s17
        %p173 = scmp.lt.s32.totalorder %s18, 8
        %s174 = scalar_select %p173, %s18, 8
        %p175 = scmp.lt.s32.totalorder %s172, 63
        %s176 = scalar_select %p175, %s172, 63
        %s177 = smul.addr %s174, 64
        %s178 = sadd.s32 %s176, %s177
        %s179 = smul.addr %s178, 4
        %s180 = scalar_lea.vmem %s0, %s179
        %s181 = smul.u32 64, %s17
      $region28: #{tpu_custom_call.1} parent=23 // pred_fallthru
        _
      // Predicated region
      $region29: #{tpu_custom_call.1} parent=23 // pred_check
        %p182 = pneg %p70
      $region30: #{tpu_custom_call.1} parent=23 // pred_check_branch
        %184 = sbr.rel (%p182) target = $region32
      $region31: #{tpu_custom_call.1} parent=23 // pred_region
        %p185 = scmp.lt.s32.totalorder %s18, 8
        %s186 = scalar_select %p185, %s18, 8
        %s187 = smul.addr %s186, 2
        %s188 = scalar_lea.vmem %s1, %s187
      $region32: #{tpu_custom_call.1} parent=23 // pred_fallthru
        _
    $region24: #{tpu_custom_call.1} parent=5 // pred_fallthru
      _
    %p189 = scmp.le.s32.totalorder 1, %s10
    %p190 = scmp.lt.s32.totalorder %s10, 10
    %p191 = pnand %p189, %p190
    %p192 = pneg %p191
    // Predicated region
    $region33: #{tpu_custom_call.1} parent=5 // pred_check
      _
    $region34: #{tpu_custom_call.1} parent=5 // pred_check_branch
      %194 = sbr.rel (%p191) target = $region36
    $region35: #{tpu_custom_call.1} parent=5 // pred_region
      %s195 = ssub.s32 %s10, 1
      %s196 = smul.u32 64, %s19
      %p197 = scmp.lt.s32.totalorder %s20, 8
      %s198 = scalar_select %p197, %s20, 8
      %p199 = scmp.lt.s32.totalorder %s196, 63
      %s200 = scalar_select %p199, %s196, 63
      %s201 = smul.addr %s198, 64
      %s202 = sadd.s32 %s200, %s201
      %s203 = smul.addr %s202, 4
      %s204 = scalar_lea.vmem %s0, %s203
      %p205 = pneg %p50
      %p206 = pneg %p47
      %p207 = scmp.lt.s32.totalorder %s20, 8
      %s208 = scalar_select %p207, %s20, 8
      %s209 = smul.addr %s208, 2
      %s210 = scalar_lea.vmem %s1, %s209
      %p211 = pneg %p76
      %p212 = pneg %p73
      %p213 = pneg %p97
      %p214 = pneg %p94
      %p215 = pneg %p118
      %p216 = pneg %p115
      %p217 = pneg %p144
      %p218 = pneg %p141
      %s219 = smul.u32 64, %s19
      %p220 = scmp.lt.s32.totalorder %s219, 63
      %s221 = scalar_select %p220, %s219, 63
      %s222 = smul.addr %s221, 8
      %s223 = scalar_lea.vmem %s4, %s222
      %s224 = smul.u32 64, %s19
      %p225 = scmp.lt.s32.totalorder %s20, 8
      %s226 = scalar_select %p225, %s20, 8
      %p227 = scmp.lt.s32.totalorder %s224, 63
      %s228 = scalar_select %p227, %s224, 63
      %s229 = smul.addr %s226, 64
      %s230 = sadd.s32 %s228, %s229
      %s231 = smul.addr %s230, 4
      %s232 = scalar_lea.vmem %s0, %s231
      %s233 = smul.u32 64, %s19
      %p234 = scmp.lt.s32.totalorder %s20, 8
      %s235 = scalar_select %p234, %s20, 8
      %s236 = smul.addr %s235, 2
      %s237 = scalar_lea.vmem %s1, %s236
      %s238 = smul.u32 64, %s19
      %p239 = scmp.lt.s32.totalorder %s238, 63
      %s240 = scalar_select %p239, %s238, 63
      %s241 = smul.addr %s240, 8
      %s242 = scalar_lea.vmem %s4, %s241
      %s243 = smul.u32 64, %s19
      %p245 = scmp.eq.s32.totalorder %s20, 0
      // Predicated region
      $region37: #{tpu_custom_call.1} parent=35 // pred_check
        %p246 = pneg %p245
      $region38: #{tpu_custom_call.1} parent=35 // pred_check_branch
        %248 = sbr.rel (%p246) target = $region40
      $region39: #{tpu_custom_call.1} parent=35 // pred_region
        %vm249 = vcmask 64512
        %250 = vst.msk [vmem:[#allocation2] sm:$0xff] %vm249, 0.0
        %251 = vst.msk [vmem:[#allocation2 + $0x8] sm:$0xff] %vm249, 0.0
        %252 = vst.msk [vmem:[#allocation2 + $0x10] sm:$0xff] %vm249, 0.0
        %253 = vst.msk [vmem:[#allocation2 + $0x18] sm:$0xff] %vm249, 0.0
        %254 = vst.msk [vmem:[#allocation2 + $0x20] sm:$0xff] %vm249, 0.0
        %255 = vst.msk [vmem:[#allocation2 + $0x28] sm:$0xff] %vm249, 0.0
        %256 = vst.msk [vmem:[#allocation2 + $0x30] sm:$0xff] %vm249, 0.0
        %257 = vst.msk [vmem:[#allocation2 + $0x38] sm:$0xff] %vm249, 0.0
        %258 = vst.msk [vmem:[#allocation2 + $0x40] sm:$0xff] %vm249, 0.0
        %259 = vst.msk [vmem:[#allocation2 + $0x48] sm:$0xff] %vm249, 0.0
        %260 = vst.msk [vmem:[#allocation2 + $0x50] sm:$0xff] %vm249, 0.0
        %261 = vst.msk [vmem:[#allocation2 + $0x58] sm:$0xff] %vm249, 0.0
        %262 = vst.msk [vmem:[#allocation2 + $0x60] sm:$0xff] %vm249, 0.0
        %263 = vst.msk [vmem:[#allocation2 + $0x68] sm:$0xff] %vm249, 0.0
        %264 = vst.msk [vmem:[#allocation2 + $0x70] sm:$0xff] %vm249, 0.0
        %265 = vst.msk [vmem:[#allocation2 + $0x78] sm:$0xff] %vm249, 0.0
        %266 = vst.msk [vmem:[#allocation2 + $0x80] sm:$0xff] %vm249, 0.0
        %267 = vst.msk [vmem:[#allocation2 + $0x88] sm:$0xff] %vm249, 0.0
        %268 = vst.msk [vmem:[#allocation2 + $0x90] sm:$0xff] %vm249, 0.0
        %269 = vst.msk [vmem:[#allocation2 + $0x98] sm:$0xff] %vm249, 0.0
        %270 = vst.msk [vmem:[#allocation2 + $0xa0] sm:$0xff] %vm249, 0.0
        %271 = vst.msk [vmem:[#allocation2 + $0xa8] sm:$0xff] %vm249, 0.0
        %272 = vst.msk [vmem:[#allocation2 + $0xb0] sm:$0xff] %vm249, 0.0
        %273 = vst.msk [vmem:[#allocation2 + $0xb8] sm:$0xff] %vm249, 0.0
        %274 = vst.msk [vmem:[#allocation2 + $0xc0] sm:$0xff] %vm249, 0.0
        %275 = vst.msk [vmem:[#allocation2 + $0xc8] sm:$0xff] %vm249, 0.0
        %276 = vst.msk [vmem:[#allocation2 + $0xd0] sm:$0xff] %vm249, 0.0
        %277 = vst.msk [vmem:[#allocation2 + $0xd8] sm:$0xff] %vm249, 0.0
        %278 = vst.msk [vmem:[#allocation2 + $0xe0] sm:$0xff] %vm249, 0.0
        %279 = vst.msk [vmem:[#allocation2 + $0xe8] sm:$0xff] %vm249, 0.0
        %280 = vst.msk [vmem:[#allocation2 + $0xf0] sm:$0xff] %vm249, 0.0
        %281 = vst.msk [vmem:[#allocation2 + $0xf8] sm:$0xff] %vm249, 0.0
        %282 = vst.msk [vmem:[#allocation2 + $0x100] sm:$0xff] %vm249, 0.0
        %283 = vst.msk [vmem:[#allocation2 + $0x108] sm:$0xff] %vm249, 0.0
        %284 = vst.msk [vmem:[#allocation2 + $0x110] sm:$0xff] %vm249, 0.0
        %285 = vst.msk [vmem:[#allocation2 + $0x118] sm:$0xff] %vm249, 0.0
        %286 = vst.msk [vmem:[#allocation2 + $0x120] sm:$0xff] %vm249, 0.0
        %287 = vst.msk [vmem:[#allocation2 + $0x128] sm:$0xff] %vm249, 0.0
        %288 = vst.msk [vmem:[#allocation2 + $0x130] sm:$0xff] %vm249, 0.0
        %289 = vst.msk [vmem:[#allocation2 + $0x138] sm:$0xff] %vm249, 0.0
        %290 = vst.msk [vmem:[#allocation2 + $0x140] sm:$0xff] %vm249, 0.0
        %291 = vst.msk [vmem:[#allocation2 + $0x148] sm:$0xff] %vm249, 0.0
        %292 = vst.msk [vmem:[#allocation2 + $0x150] sm:$0xff] %vm249, 0.0
        %293 = vst.msk [vmem:[#allocation2 + $0x158] sm:$0xff] %vm249, 0.0
        %294 = vst.msk [vmem:[#allocation2 + $0x160] sm:$0xff] %vm249, 0.0
        %295 = vst.msk [vmem:[#allocation2 + $0x168] sm:$0xff] %vm249, 0.0
        %296 = vst.msk [vmem:[#allocation2 + $0x170] sm:$0xff] %vm249, 0.0
        %297 = vst.msk [vmem:[#allocation2 + $0x178] sm:$0xff] %vm249, 0.0
        %298 = vst.msk [vmem:[#allocation2 + $0x180] sm:$0xff] %vm249, 0.0
        %299 = vst.msk [vmem:[#allocation2 + $0x188] sm:$0xff] %vm249, 0.0
        %300 = vst.msk [vmem:[#allocation2 + $0x190] sm:$0xff] %vm249, 0.0
        %301 = vst.msk [vmem:[#allocation2 + $0x198] sm:$0xff] %vm249, 0.0
        %302 = vst.msk [vmem:[#allocation2 + $0x1a0] sm:$0xff] %vm249, 0.0
        %303 = vst.msk [vmem:[#allocation2 + $0x1a8] sm:$0xff] %vm249, 0.0
        %304 = vst.msk [vmem:[#allocation2 + $0x1b0] sm:$0xff] %vm249, 0.0
        %305 = vst.msk [vmem:[#allocation2 + $0x1b8] sm:$0xff] %vm249, 0.0
        %306 = vst.msk [vmem:[#allocation2 + $0x1c0] sm:$0xff] %vm249, 0.0
        %307 = vst.msk [vmem:[#allocation2 + $0x1c8] sm:$0xff] %vm249, 0.0
        %308 = vst.msk [vmem:[#allocation2 + $0x1d0] sm:$0xff] %vm249, 0.0
        %309 = vst.msk [vmem:[#allocation2 + $0x1d8] sm:$0xff] %vm249, 0.0
        %310 = vst.msk [vmem:[#allocation2 + $0x1e0] sm:$0xff] %vm249, 0.0
        %311 = vst.msk [vmem:[#allocation2 + $0x1e8] sm:$0xff] %vm249, 0.0
        %312 = vst.msk [vmem:[#allocation2 + $0x1f0] sm:$0xff] %vm249, 0.0
        %313 = vst.msk [vmem:[#allocation2 + $0x1f8] sm:$0xff] %vm249, 0.0
      $region40: #{tpu_custom_call.1} parent=35 // pred_fallthru
        _
      %v314 = vld [vmem:[#allocation2] sm:$0xff]
      %v315 = vld [vmem:[#allocation2 + $0x8] sm:$0xff]
      %v316 = vld [vmem:[#allocation2 + $0x10] sm:$0xff]
      %v317 = vld [vmem:[#allocation2 + $0x18] sm:$0xff]
      %v318 = vld [vmem:[#allocation2 + $0x20] sm:$0xff]
      %v319 = vld [vmem:[#allocation2 + $0x28] sm:$0xff]
      %v320 = vld [vmem:[#allocation2 + $0x30] sm:$0xff]
      %v321 = vld [vmem:[#allocation2 + $0x38] sm:$0xff]
      %v322 = vld [vmem:[#allocation2 + $0x40] sm:$0xff]
      %v323 = vld [vmem:[#allocation2 + $0x48] sm:$0xff]
      %v324 = vld [vmem:[#allocation2 + $0x50] sm:$0xff]
      %v325 = vld [vmem:[#allocation2 + $0x58] sm:$0xff]
      %v326 = vld [vmem:[#allocation2 + $0x60] sm:$0xff]
      %v327 = vld [vmem:[#allocation2 + $0x68] sm:$0xff]
      %v328 = vld [vmem:[#allocation2 + $0x70] sm:$0xff]
      %v329 = vld [vmem:[#allocation2 + $0x78] sm:$0xff]
      %v330 = vld [vmem:[#allocation2 + $0x80] sm:$0xff]
      %v331 = vld [vmem:[#allocation2 + $0x88] sm:$0xff]
      %v332 = vld [vmem:[#allocation2 + $0x90] sm:$0xff]
      %v333 = vld [vmem:[#allocation2 + $0x98] sm:$0xff]
      %v334 = vld [vmem:[#allocation2 + $0xa0] sm:$0xff]
      %v335 = vld [vmem:[#allocation2 + $0xa8] sm:$0xff]
      %v336 = vld [vmem:[#allocation2 + $0xb0] sm:$0xff]
      %v337 = vld [vmem:[#allocation2 + $0xb8] sm:$0xff]
      %v338 = vld [vmem:[#allocation2 + $0xc0] sm:$0xff]
      %v339 = vld [vmem:[#allocation2 + $0xc8] sm:$0xff]
      %v340 = vld [vmem:[#allocation2 + $0xd0] sm:$0xff]
      %v341 = vld [vmem:[#allocation2 + $0xd8] sm:$0xff]
      %v342 = vld [vmem:[#allocation2 + $0xe0] sm:$0xff]
      %v343 = vld [vmem:[#allocation2 + $0xe8] sm:$0xff]
      %v344 = vld [vmem:[#allocation2 + $0xf0] sm:$0xff]
      %v345 = vld [vmem:[#allocation2 + $0xf8] sm:$0xff]
      %v346 = vld [vmem:[#allocation2 + $0x100] sm:$0xff]
      %v347 = vld [vmem:[#allocation2 + $0x108] sm:$0xff]
      %v348 = vld [vmem:[#allocation2 + $0x110] sm:$0xff]
      %v349 = vld [vmem:[#allocation2 + $0x118] sm:$0xff]
      %v350 = vld [vmem:[#allocation2 + $0x120] sm:$0xff]
      %v351 = vld [vmem:[#allocation2 + $0x128] sm:$0xff]
      %v352 = vld [vmem:[#allocation2 + $0x130] sm:$0xff]
      %v353 = vld [vmem:[#allocation2 + $0x138] sm:$0xff]
      %v354 = vld [vmem:[#allocation2 + $0x140] sm:$0xff]
      %v355 = vld [vmem:[#allocation2 + $0x148] sm:$0xff]
      %v356 = vld [vmem:[#allocation2 + $0x150] sm:$0xff]
      %v357 = vld [vmem:[#allocation2 + $0x158] sm:$0xff]
      %v358 = vld [vmem:[#allocation2 + $0x160] sm:$0xff]
      %v359 = vld [vmem:[#allocation2 + $0x168] sm:$0xff]
      %v360 = vld [vmem:[#allocation2 + $0x170] sm:$0xff]
      %v361 = vld [vmem:[#allocation2 + $0x178] sm:$0xff]
      %v362 = vld [vmem:[#allocation2 + $0x180] sm:$0xff]
      %v363 = vld [vmem:[#allocation2 + $0x188] sm:$0xff]
      %v364 = vld [vmem:[#allocation2 + $0x190] sm:$0xff]
      %v365 = vld [vmem:[#allocation2 + $0x198] sm:$0xff]
      %v366 = vld [vmem:[#allocation2 + $0x1a0] sm:$0xff]
      %v367 = vld [vmem:[#allocation2 + $0x1a8] sm:$0xff]
      %v368 = vld [vmem:[#allocation2 + $0x1b0] sm:$0xff]
      %v369 = vld [vmem:[#allocation2 + $0x1b8] sm:$0xff]
      %v370 = vld [vmem:[#allocation2 + $0x1c0] sm:$0xff]
      %v371 = vld [vmem:[#allocation2 + $0x1c8] sm:$0xff]
      %v372 = vld [vmem:[#allocation2 + $0x1d0] sm:$0xff]
      %v373 = vld [vmem:[#allocation2 + $0x1d8] sm:$0xff]
      %v374 = vld [vmem:[#allocation2 + $0x1e0] sm:$0xff]
      %v375 = vld [vmem:[#allocation2 + $0x1e8] sm:$0xff]
      %v376 = vld [vmem:[#allocation2 + $0x1f0] sm:$0xff]
      %v377 = vld [vmem:[#allocation2 + $0x1f8] sm:$0xff]
      %v378 = vld [vmem:[%s232] sm:$0xf]
      %v379 = vld [vmem:[%s232 + $0x4] sm:$0xf]
      %v380 = vld [vmem:[%s232 + $0x8] sm:$0xf]
      %v381 = vld [vmem:[%s232 + $0xc] sm:$0xf]
      %v382 = vld [vmem:[%s232 + $0x10] sm:$0xf]
      %v383 = vld [vmem:[%s232 + $0x14] sm:$0xf]
      %v384 = vld [vmem:[%s232 + $0x18] sm:$0xf]
      %v385 = vld [vmem:[%s232 + $0x1c] sm:$0xf]
      %v386 = vld [vmem:[%s232 + $0x20] sm:$0xf]
      %v387 = vld [vmem:[%s232 + $0x24] sm:$0xf]
      %v388 = vld [vmem:[%s232 + $0x28] sm:$0xf]
      %v389 = vld [vmem:[%s232 + $0x2c] sm:$0xf]
      %v390 = vld [vmem:[%s232 + $0x30] sm:$0xf]
      %v391 = vld [vmem:[%s232 + $0x34] sm:$0xf]
      %v392 = vld [vmem:[%s232 + $0x38] sm:$0xf]
      %v393 = vld [vmem:[%s232 + $0x3c] sm:$0xf]
      %v394 = vld [vmem:[%s232 + $0x40] sm:$0xf]
      %v395 = vld [vmem:[%s232 + $0x44] sm:$0xf]
      %v396 = vld [vmem:[%s232 + $0x48] sm:$0xf]
      %v397 = vld [vmem:[%s232 + $0x4c] sm:$0xf]
      %v398 = vld [vmem:[%s232 + $0x50] sm:$0xf]
      %v399 = vld [vmem:[%s232 + $0x54] sm:$0xf]
      %v400 = vld [vmem:[%s232 + $0x58] sm:$0xf]
      %v401 = vld [vmem:[%s232 + $0x5c] sm:$0xf]
      %v402 = vld [vmem:[%s232 + $0x60] sm:$0xf]
      %v403 = vld [vmem:[%s232 + $0x64] sm:$0xf]
      %v404 = vld [vmem:[%s232 + $0x68] sm:$0xf]
      %v405 = vld [vmem:[%s232 + $0x6c] sm:$0xf]
      %v406 = vld [vmem:[%s232 + $0x70] sm:$0xf]
      %v407 = vld [vmem:[%s232 + $0x74] sm:$0xf]
      %v408 = vld [vmem:[%s232 + $0x78] sm:$0xf]
      %v409 = vld [vmem:[%s232 + $0x7c] sm:$0xf]
      %v410 = vld [vmem:[%s232 + $0x80] sm:$0xf]
      %v411 = vld [vmem:[%s232 + $0x84] sm:$0xf]
      %v412 = vld [vmem:[%s232 + $0x88] sm:$0xf]
      %v413 = vld [vmem:[%s232 + $0x8c] sm:$0xf]
      %v414 = vld [vmem:[%s232 + $0x90] sm:$0xf]
      %v415 = vld [vmem:[%s232 + $0x94] sm:$0xf]
      %v416 = vld [vmem:[%s232 + $0x98] sm:$0xf]
      %v417 = vld [vmem:[%s232 + $0x9c] sm:$0xf]
      %v418 = vld [vmem:[%s232 + $0xa0] sm:$0xf]
      %v419 = vld [vmem:[%s232 + $0xa4] sm:$0xf]
      %v420 = vld [vmem:[%s232 + $0xa8] sm:$0xf]
      %v421 = vld [vmem:[%s232 + $0xac] sm:$0xf]
      %v422 = vld [vmem:[%s232 + $0xb0] sm:$0xf]
      %v423 = vld [vmem:[%s232 + $0xb4] sm:$0xf]
      %v424 = vld [vmem:[%s232 + $0xb8] sm:$0xf]
      %v425 = vld [vmem:[%s232 + $0xbc] sm:$0xf]
      %v426 = vld [vmem:[%s232 + $0xc0] sm:$0xf]
      %v427 = vld [vmem:[%s232 + $0xc4] sm:$0xf]
      %v428 = vld [vmem:[%s232 + $0xc8] sm:$0xf]
      %v429 = vld [vmem:[%s232 + $0xcc] sm:$0xf]
      %v430 = vld [vmem:[%s232 + $0xd0] sm:$0xf]
      %v431 = vld [vmem:[%s232 + $0xd4] sm:$0xf]
      %v432 = vld [vmem:[%s232 + $0xd8] sm:$0xf]
      %v433 = vld [vmem:[%s232 + $0xdc] sm:$0xf]
      %v434 = vld [vmem:[%s232 + $0xe0] sm:$0xf]
      %v435 = vld [vmem:[%s232 + $0xe4] sm:$0xf]
      %v436 = vld [vmem:[%s232 + $0xe8] sm:$0xf]
      %v437 = vld [vmem:[%s232 + $0xec] sm:$0xf]
      %v438 = vld [vmem:[%s232 + $0xf0] sm:$0xf]
      %v439 = vld [vmem:[%s232 + $0xf4] sm:$0xf]
      %v440 = vld [vmem:[%s232 + $0xf8] sm:$0xf]
      %v441 = vld [vmem:[%s232 + $0xfc] sm:$0xf]
      %v442 = vld [vmem:[%s237] sm:$0x3]
      %v507 = vunpack.c.l.b16 %v378
      %v508 = vunpack.c.l.b16 %v379
      %v509 = vunpack.c.l.b16 %v380
      %v510 = vunpack.c.l.b16 %v381
      %v511 = vunpack.c.l.b16 %v382
      %v512 = vunpack.c.l.b16 %v383
      %v513 = vunpack.c.l.b16 %v384
      %v514 = vunpack.c.l.b16 %v385
      %v515 = vunpack.c.l.b16 %v386
      %v516 = vunpack.c.l.b16 %v387
      %v517 = vunpack.c.l.b16 %v388
      %v518 = vunpack.c.l.b16 %v389
      %v519 = vunpack.c.l.b16 %v390
      %v520 = vunpack.c.l.b16 %v391
      %v521 = vunpack.c.l.b16 %v392
      %v522 = vunpack.c.l.b16 %v393
      %v523 = vunpack.c.l.b16 %v394
      %v524 = vunpack.c.l.b16 %v395
      %v525 = vunpack.c.l.b16 %v396
      %v526 = vunpack.c.l.b16 %v397
      %v527 = vunpack.c.l.b16 %v398
      %v528 = vunpack.c.l.b16 %v399
      %v529 = vunpack.c.l.b16 %v400
      %v530 = vunpack.c.l.b16 %v401
      %v531 = vunpack.c.l.b16 %v402
      %v532 = vunpack.c.l.b16 %v403
      %v533 = vunpack.c.l.b16 %v404
      %v534 = vunpack.c.l.b16 %v405
      %v535 = vunpack.c.l.b16 %v406
      %v536 = vunpack.c.l.b16 %v407
      %v537 = vunpack.c.l.b16 %v408
      %v538 = vunpack.c.l.b16 %v409
      %v539 = vunpack.c.l.b16 %v410
      %v540 = vunpack.c.l.b16 %v411
      %v541 = vunpack.c.l.b16 %v412
      %v542 = vunpack.c.l.b16 %v413
      %v543 = vunpack.c.l.b16 %v414
      %v544 = vunpack.c.l.b16 %v415
      %v545 = vunpack.c.l.b16 %v416
      %v546 = vunpack.c.l.b16 %v417
      %v547 = vunpack.c.l.b16 %v418
      %v548 = vunpack.c.l.b16 %v419
      %v549 = vunpack.c.l.b16 %v420
      %v550 = vunpack.c.l.b16 %v421
      %v551 = vunpack.c.l.b16 %v422
      %v552 = vunpack.c.l.b16 %v423
      %v553 = vunpack.c.l.b16 %v424
      %v554 = vunpack.c.l.b16 %v425
      %v555 = vunpack.c.l.b16 %v426
      %v556 = vunpack.c.l.b16 %v427
      %v557 = vunpack.c.l.b16 %v428
      %v558 = vunpack.c.l.b16 %v429
      %v559 = vunpack.c.l.b16 %v430
      %v560 = vunpack.c.l.b16 %v431
      %v561 = vunpack.c.l.b16 %v432
      %v562 = vunpack.c.l.b16 %v433
      %v563 = vunpack.c.l.b16 %v434
      %v564 = vunpack.c.l.b16 %v435
      %v565 = vunpack.c.l.b16 %v436
      %v566 = vunpack.c.l.b16 %v437
      %v567 = vunpack.c.l.b16 %v438
      %v568 = vunpack.c.l.b16 %v439
      %v569 = vunpack.c.l.b16 %v440
      %v570 = vunpack.c.l.b16 %v441
      %v571 = vpack.c.b16 %v508, %v507
      %v572 = vpack.c.b16 %v510, %v509
      %v573 = vpack.c.b16 %v512, %v511
      %v574 = vpack.c.b16 %v514, %v513
      %v575 = vpack.c.b16 %v516, %v515
      %v576 = vpack.c.b16 %v518, %v517
      %v577 = vpack.c.b16 %v520, %v519
      %v578 = vpack.c.b16 %v522, %v521
      %v579 = vpack.c.b16 %v524, %v523
      %v580 = vpack.c.b16 %v526, %v525
      %v581 = vpack.c.b16 %v528, %v527
      %v582 = vpack.c.b16 %v530, %v529
      %v583 = vpack.c.b16 %v532, %v531
      %v584 = vpack.c.b16 %v534, %v533
      %v585 = vpack.c.b16 %v536, %v535
      %v586 = vpack.c.b16 %v538, %v537
      %v587 = vpack.c.b16 %v540, %v539
      %v588 = vpack.c.b16 %v542, %v541
      %v589 = vpack.c.b16 %v544, %v543
      %v590 = vpack.c.b16 %v546, %v545
      %v591 = vpack.c.b16 %v548, %v547
      %v592 = vpack.c.b16 %v550, %v549
      %v593 = vpack.c.b16 %v552, %v551
      %v594 = vpack.c.b16 %v554, %v553
      %v595 = vpack.c.b16 %v556, %v555
      %v596 = vpack.c.b16 %v558, %v557
      %v597 = vpack.c.b16 %v560, %v559
      %v598 = vpack.c.b16 %v562, %v561
      %v599 = vpack.c.b16 %v564, %v563
      %v600 = vpack.c.b16 %v566, %v565
      %v601 = vpack.c.b16 %v568, %v567
      %v602 = vpack.c.b16 %v570, %v569
      %vm603 = vcmask 23552
      %v605 = vsel %vm603, %v571, 0
      %v608 = vsel %vm603, %v572, 0
      %v611 = vsel %vm603, %v573, 0
      %v614 = vsel %vm603, %v574, 0
      %v617 = vsel %vm603, %v575, 0
      %v620 = vsel %vm603, %v576, 0
      %v623 = vsel %vm603, %v577, 0
      %v626 = vsel %vm603, %v578, 0
      %v629 = vsel %vm603, %v579, 0
      %v632 = vsel %vm603, %v580, 0
      %v635 = vsel %vm603, %v581, 0
      %v638 = vsel %vm603, %v582, 0
      %v641 = vsel %vm603, %v583, 0
      %v644 = vsel %vm603, %v584, 0
      %v647 = vsel %vm603, %v585, 0
      %v650 = vsel %vm603, %v586, 0
      %v653 = vsel %vm603, %v587, 0
      %v656 = vsel %vm603, %v588, 0
      %v659 = vsel %vm603, %v589, 0
      %v662 = vsel %vm603, %v590, 0
      %v665 = vsel %vm603, %v591, 0
      %v668 = vsel %vm603, %v592, 0
      %v671 = vsel %vm603, %v593, 0
      %v674 = vsel %vm603, %v594, 0
      %v677 = vsel %vm603, %v595, 0
      %v680 = vsel %vm603, %v596, 0
      %v683 = vsel %vm603, %v597, 0
      %v686 = vsel %vm603, %v598, 0
      %v689 = vsel %vm603, %v599, 0
      %v692 = vsel %vm603, %v600, 0
      %v695 = vsel %vm603, %v601, 0
      %v698 = vsel %vm603, %v602, 0
      %vm700 = vcmask 1040384
      %vm701 = vcmask 1041408
      %v702 = vsel %vm700, 4294967295, 65535
      %v703 = vsel %vm701, %v702, 0
      %v705 = vand.u32 %v442, %v703
      %707 = vmatpush.bf16.msra.mxu0 0
      %708 = vmatpush.bf16.msra.mxu0 0
      %709 = vmatpush.bf16.msra.mxu0 0
      %710 = vmatpush.bf16.msra.mxu0 0
      %711 = vmatpush.bf16.msra.mxu0 0
      %712 = vmatpush.bf16.msra.mxu0 0
      %713 = vmatpush.bf16.msra.mxu0 0
      %714 = vmatpush.bf16.msra.mxu0 %v705
      %715 = vmatmul.bf16.gmra.mxu0 %v605
      %v716 = vpop.f32.mrf.mxu0
      %v717 = vadd.f32 0.0, %v716
      %v718 = vpop.f32.mrf.mxu0
      %v719 = vadd.f32 0.0, %v718
      %720 = vmatmul.bf16.gmra.mxu0 %v608
      %v721 = vpop.f32.mrf.mxu0
      %v722 = vadd.f32 0.0, %v721
      %v723 = vpop.f32.mrf.mxu0
      %v724 = vadd.f32 0.0, %v723
      %725 = vmatmul.bf16.gmra.mxu0 %v611
      %v726 = vpop.f32.mrf.mxu0
      %v727 = vadd.f32 0.0, %v726
      %v728 = vpop.f32.mrf.mxu0
      %v729 = vadd.f32 0.0, %v728
      %730 = vmatmul.bf16.gmra.mxu0 %v614
      %v731 = vpop.f32.mrf.mxu0
      %v732 = vadd.f32 0.0, %v731
      %v733 = vpop.f32.mrf.mxu0
      %v734 = vadd.f32 0.0, %v733
      %735 = vmatmul.bf16.gmra.mxu0 %v617
      %v736 = vpop.f32.mrf.mxu0
      %v737 = vadd.f32 0.0, %v736
      %v738 = vpop.f32.mrf.mxu0
      %v739 = vadd.f32 0.0, %v738
      %740 = vmatmul.bf16.gmra.mxu0 %v620
      %v741 = vpop.f32.mrf.mxu0
      %v742 = vadd.f32 0.0, %v741
      %v743 = vpop.f32.mrf.mxu0
      %v744 = vadd.f32 0.0, %v743
      %745 = vmatmul.bf16.gmra.mxu0 %v623
      %v746 = vpop.f32.mrf.mxu0
      %v747 = vadd.f32 0.0, %v746
      %v748 = vpop.f32.mrf.mxu0
      %v749 = vadd.f32 0.0, %v748
      %750 = vmatmul.bf16.gmra.mxu0 %v626
      %v751 = vpop.f32.mrf.mxu0
      %v752 = vadd.f32 0.0, %v751
      %v753 = vpop.f32.mrf.mxu0
      %v754 = vadd.f32 0.0, %v753
      %755 = vmatmul.bf16.gmra.mxu0 %v629
      %v756 = vpop.f32.mrf.mxu0
      %v757 = vadd.f32 0.0, %v756
      %v758 = vpop.f32.mrf.mxu0
      %v759 = vadd.f32 0.0, %v758
      %760 = vmatmul.bf16.gmra.mxu0 %v632
      %v761 = vpop.f32.mrf.mxu0
      %v762 = vadd.f32 0.0, %v761
      %v763 = vpop.f32.mrf.mxu0
      %v764 = vadd.f32 0.0, %v763
      %765 = vmatmul.bf16.gmra.mxu0 %v635
      %v766 = vpop.f32.mrf.mxu0
      %v767 = vadd.f32 0.0, %v766
      %v768 = vpop.f32.mrf.mxu0
      %v769 = vadd.f32 0.0, %v768
      %770 = vmatmul.bf16.gmra.mxu0 %v638
      %v771 = vpop.f32.mrf.mxu0
      %v772 = vadd.f32 0.0, %v771
      %v773 = vpop.f32.mrf.mxu0
      %v774 = vadd.f32 0.0, %v773
      %775 = vmatmul.bf16.gmra.mxu0 %v641
      %v776 = vpop.f32.mrf.mxu0
      %v777 = vadd.f32 0.0, %v776
      %v778 = vpop.f32.mrf.mxu0
      %v779 = vadd.f32 0.0, %v778
      %780 = vmatmul.bf16.gmra.mxu0 %v644
      %v781 = vpop.f32.mrf.mxu0
      %v782 = vadd.f32 0.0, %v781
      %v783 = vpop.f32.mrf.mxu0
      %v784 = vadd.f32 0.0, %v783
      %785 = vmatmul.bf16.gmra.mxu0 %v647
      %v786 = vpop.f32.mrf.mxu0
      %v787 = vadd.f32 0.0, %v786
      %v788 = vpop.f32.mrf.mxu0
      %v789 = vadd.f32 0.0, %v788
      %790 = vmatmul.bf16.gmra.mxu0 %v650
      %v791 = vpop.f32.mrf.mxu0
      %v792 = vadd.f32 0.0, %v791
      %v793 = vpop.f32.mrf.mxu0
      %v794 = vadd.f32 0.0, %v793
      %795 = vmatmul.bf16.gmra.mxu0 %v653
      %v796 = vpop.f32.mrf.mxu0
      %v797 = vadd.f32 0.0, %v796
      %v798 = vpop.f32.mrf.mxu0
      %v799 = vadd.f32 0.0, %v798
      %800 = vmatmul.bf16.gmra.mxu0 %v656
      %v801 = vpop.f32.mrf.mxu0
      %v802 = vadd.f32 0.0, %v801
      %v803 = vpop.f32.mrf.mxu0
      %v804 = vadd.f32 0.0, %v803
      %805 = vmatmul.bf16.gmra.mxu0 %v659
      %v806 = vpop.f32.mrf.mxu0
      %v807 = vadd.f32 0.0, %v806
      %v808 = vpop.f32.mrf.mxu0
      %v809 = vadd.f32 0.0, %v808
      %810 = vmatmul.bf16.gmra.mxu0 %v662
      %v811 = vpop.f32.mrf.mxu0
      %v812 = vadd.f32 0.0, %v811
      %v813 = vpop.f32.mrf.mxu0
      %v814 = vadd.f32 0.0, %v813
      %815 = vmatmul.bf16.gmra.mxu0 %v665
      %v816 = vpop.f32.mrf.mxu0
      %v817 = vadd.f32 0.0, %v816
      %v818 = vpop.f32.mrf.mxu0
      %v819 = vadd.f32 0.0, %v818
      %820 = vmatmul.bf16.gmra.mxu0 %v668
      %v821 = vpop.f32.mrf.mxu0
      %v822 = vadd.f32 0.0, %v821
      %v823 = vpop.f32.mrf.mxu0
      %v824 = vadd.f32 0.0, %v823
      %825 = vmatmul.bf16.gmra.mxu0 %v671
      %v826 = vpop.f32.mrf.mxu0
      %v827 = vadd.f32 0.0, %v826
      %v828 = vpop.f32.mrf.mxu0
      %v829 = vadd.f32 0.0, %v828
      %830 = vmatmul.bf16.gmra.mxu0 %v674
      %v831 = vpop.f32.mrf.mxu0
      %v832 = vadd.f32 0.0, %v831
      %v833 = vpop.f32.mrf.mxu0
      %v834 = vadd.f32 0.0, %v833
      %835 = vmatmul.bf16.gmra.mxu0 %v677
      %v836 = vpop.f32.mrf.mxu0
      %v837 = vadd.f32 0.0, %v836
      %v838 = vpop.f32.mrf.mxu0
      %v839 = vadd.f32 0.0, %v838
      %840 = vmatmul.bf16.gmra.mxu0 %v680
      %v841 = vpop.f32.mrf.mxu0
      %v842 = vadd.f32 0.0, %v841
      %v843 = vpop.f32.mrf.mxu0
      %v844 = vadd.f32 0.0, %v843
      %845 = vmatmul.bf16.gmra.mxu0 %v683
      %v846 = vpop.f32.mrf.mxu0
      %v847 = vadd.f32 0.0, %v846
      %v848 = vpop.f32.mrf.mxu0
      %v849 = vadd.f32 0.0, %v848
      %850 = vmatmul.bf16.gmra.mxu0 %v686
      %v851 = vpop.f32.mrf.mxu0
      %v852 = vadd.f32 0.0, %v851
      %v853 = vpop.f32.mrf.mxu0
      %v854 = vadd.f32 0.0, %v853
      %855 = vmatmul.bf16.gmra.mxu0 %v689
      %v856 = vpop.f32.mrf.mxu0
      %v857 = vadd.f32 0.0, %v856
      %v858 = vpop.f32.mrf.mxu0
      %v859 = vadd.f32 0.0, %v858
      %860 = vmatmul.bf16.gmra.mxu0 %v692
      %v861 = vpop.f32.mrf.mxu0
      %v862 = vadd.f32 0.0, %v861
      %v863 = vpop.f32.mrf.mxu0
      %v864 = vadd.f32 0.0, %v863
      %865 = vmatmul.bf16.gmra.mxu0 %v695
      %v866 = vpop.f32.mrf.mxu0
      %v867 = vadd.f32 0.0, %v866
      %v868 = vpop.f32.mrf.mxu0
      %v869 = vadd.f32 0.0, %v868
      %870 = vmatmul.bf16.gmra.mxu0 %v698
      %v871 = vpop.f32.mrf.mxu0
      %v872 = vadd.f32 0.0, %v871
      %v873 = vpop.f32.mrf.mxu0
      %v874 = vadd.f32 0.0, %v873
      %875 = vdwg.mxu0
      %v876 = vadd.f32 %v314, %v717
      %v877 = vadd.f32 %v315, %v719
      %v878 = vadd.f32 %v316, %v722
      %v879 = vadd.f32 %v317, %v724
      %v880 = vadd.f32 %v318, %v727
      %v881 = vadd.f32 %v319, %v729
      %v882 = vadd.f32 %v320, %v732
      %v883 = vadd.f32 %v321, %v734
      %v884 = vadd.f32 %v322, %v737
      %v885 = vadd.f32 %v323, %v739
      %v886 = vadd.f32 %v324, %v742
      %v887 = vadd.f32 %v325, %v744
      %v888 = vadd.f32 %v326, %v747
      %v889 = vadd.f32 %v327, %v749
      %v890 = vadd.f32 %v328, %v752
      %v891 = vadd.f32 %v329, %v754
      %v892 = vadd.f32 %v330, %v757
      %v893 = vadd.f32 %v331, %v759
      %v894 = vadd.f32 %v332, %v762
      %v895 = vadd.f32 %v333, %v764
      %v896 = vadd.f32 %v334, %v767
      %v897 = vadd.f32 %v335, %v769
      %v898 = vadd.f32 %v336, %v772
      %v899 = vadd.f32 %v337, %v774
      %v900 = vadd.f32 %v338, %v777
      %v901 = vadd.f32 %v339, %v779
      %v902 = vadd.f32 %v340, %v782
      %v903 = vadd.f32 %v341, %v784
      %v904 = vadd.f32 %v342, %v787
      %v905 = vadd.f32 %v343, %v789
      %v906 = vadd.f32 %v344, %v792
      %v907 = vadd.f32 %v345, %v794
      %v908 = vadd.f32 %v346, %v797
      %v909 = vadd.f32 %v347, %v799
      %v910 = vadd.f32 %v348, %v802
      %v911 = vadd.f32 %v349, %v804
      %v912 = vadd.f32 %v350, %v807
      %v913 = vadd.f32 %v351, %v809
      %v914 = vadd.f32 %v352, %v812
      %v915 = vadd.f32 %v353, %v814
      %v916 = vadd.f32 %v354, %v817
      %v917 = vadd.f32 %v355, %v819
      %v918 = vadd.f32 %v356, %v822
      %v919 = vadd.f32 %v357, %v824
      %v920 = vadd.f32 %v358, %v827
      %v921 = vadd.f32 %v359, %v829
      %v922 = vadd.f32 %v360, %v832
      %v923 = vadd.f32 %v361, %v834
      %v924 = vadd.f32 %v362, %v837
      %v925 = vadd.f32 %v363, %v839
      %v926 = vadd.f32 %v364, %v842
      %v927 = vadd.f32 %v365, %v844
      %v928 = vadd.f32 %v366, %v847
      %v929 = vadd.f32 %v367, %v849
      %v930 = vadd.f32 %v368, %v852
      %v931 = vadd.f32 %v369, %v854
      %v932 = vadd.f32 %v370, %v857
      %v933 = vadd.f32 %v371, %v859
      %v934 = vadd.f32 %v372, %v862
      %v935 = vadd.f32 %v373, %v864
      %v936 = vadd.f32 %v374, %v867
      %v937 = vadd.f32 %v375, %v869
      %v938 = vadd.f32 %v376, %v872
      %v939 = vadd.f32 %v377, %v874
      %vm940 = vcmask 64512
      %941 = vst.msk [vmem:[#allocation2] sm:$0xff] %vm940, %v876
      %942 = vst.msk [vmem:[#allocation2 + $0x8] sm:$0xff] %vm940, %v877
      %943 = vst.msk [vmem:[#allocation2 + $0x10] sm:$0xff] %vm940, %v878
      %944 = vst.msk [vmem:[#allocation2 + $0x18] sm:$0xff] %vm940, %v879
      %945 = vst.msk [vmem:[#allocation2 + $0x20] sm:$0xff] %vm940, %v880
      %946 = vst.msk [vmem:[#allocation2 + $0x28] sm:$0xff] %vm940, %v881
      %947 = vst.msk [vmem:[#allocation2 + $0x30] sm:$0xff] %vm940, %v882
      %948 = vst.msk [vmem:[#allocation2 + $0x38] sm:$0xff] %vm940, %v883
      %949 = vst.msk [vmem:[#allocation2 + $0x40] sm:$0xff] %vm940, %v884
      %950 = vst.msk [vmem:[#allocation2 + $0x48] sm:$0xff] %vm940, %v885
      %951 = vst.msk [vmem:[#allocation2 + $0x50] sm:$0xff] %vm940, %v886
      %952 = vst.msk [vmem:[#allocation2 + $0x58] sm:$0xff] %vm940, %v887
      %953 = vst.msk [vmem:[#allocation2 + $0x60] sm:$0xff] %vm940, %v888
      %954 = vst.msk [vmem:[#allocation2 + $0x68] sm:$0xff] %vm940, %v889
      %955 = vst.msk [vmem:[#allocation2 + $0x70] sm:$0xff] %vm940, %v890
      %956 = vst.msk [vmem:[#allocation2 + $0x78] sm:$0xff] %vm940, %v891
      %957 = vst.msk [vmem:[#allocation2 + $0x80] sm:$0xff] %vm940, %v892
      %958 = vst.msk [vmem:[#allocation2 + $0x88] sm:$0xff] %vm940, %v893
      %959 = vst.msk [vmem:[#allocation2 + $0x90] sm:$0xff] %vm940, %v894
      %960 = vst.msk [vmem:[#allocation2 + $0x98] sm:$0xff] %vm940, %v895
      %961 = vst.msk [vmem:[#allocation2 + $0xa0] sm:$0xff] %vm940, %v896
      %962 = vst.msk [vmem:[#allocation2 + $0xa8] sm:$0xff] %vm940, %v897
      %963 = vst.msk [vmem:[#allocation2 + $0xb0] sm:$0xff] %vm940, %v898
      %964 = vst.msk [vmem:[#allocation2 + $0xb8] sm:$0xff] %vm940, %v899
      %965 = vst.msk [vmem:[#allocation2 + $0xc0] sm:$0xff] %vm940, %v900
      %966 = vst.msk [vmem:[#allocation2 + $0xc8] sm:$0xff] %vm940, %v901
      %967 = vst.msk [vmem:[#allocation2 + $0xd0] sm:$0xff] %vm940, %v902
      %968 = vst.msk [vmem:[#allocation2 + $0xd8] sm:$0xff] %vm940, %v903
      %969 = vst.msk [vmem:[#allocation2 + $0xe0] sm:$0xff] %vm940, %v904
      %970 = vst.msk [vmem:[#allocation2 + $0xe8] sm:$0xff] %vm940, %v905
      %971 = vst.msk [vmem:[#allocation2 + $0xf0] sm:$0xff] %vm940, %v906
      %972 = vst.msk [vmem:[#allocation2 + $0xf8] sm:$0xff] %vm940, %v907
      %973 = vst.msk [vmem:[#allocation2 + $0x100] sm:$0xff] %vm940, %v908
      %974 = vst.msk [vmem:[#allocation2 + $0x108] sm:$0xff] %vm940, %v909
      %975 = vst.msk [vmem:[#allocation2 + $0x110] sm:$0xff] %vm940, %v910
      %976 = vst.msk [vmem:[#allocation2 + $0x118] sm:$0xff] %vm940, %v911
      %977 = vst.msk [vmem:[#allocation2 + $0x120] sm:$0xff] %vm940, %v912
      %978 = vst.msk [vmem:[#allocation2 + $0x128] sm:$0xff] %vm940, %v913
      %979 = vst.msk [vmem:[#allocation2 + $0x130] sm:$0xff] %vm940, %v914
      %980 = vst.msk [vmem:[#allocation2 + $0x138] sm:$0xff] %vm940, %v915
      %981 = vst.msk [vmem:[#allocation2 + $0x140] sm:$0xff] %vm940, %v916
      %982 = vst.msk [vmem:[#allocation2 + $0x148] sm:$0xff] %vm940, %v917
      %983 = vst.msk [vmem:[#allocation2 + $0x150] sm:$0xff] %vm940, %v918
      %984 = vst.msk [vmem:[#allocation2 + $0x158] sm:$0xff] %vm940, %v919
      %985 = vst.msk [vmem:[#allocation2 + $0x160] sm:$0xff] %vm940, %v920
      %986 = vst.msk [vmem:[#allocation2 + $0x168] sm:$0xff] %vm940, %v921
      %987 = vst.msk [vmem:[#allocation2 + $0x170] sm:$0xff] %vm940, %v922
      %988 = vst.msk [vmem:[#allocation2 + $0x178] sm:$0xff] %vm940, %v923
      %989 = vst.msk [vmem:[#allocation2 + $0x180] sm:$0xff] %vm940, %v924
      %990 = vst.msk [vmem:[#allocation2 + $0x188] sm:$0xff] %vm940, %v925
      %991 = vst.msk [vmem:[#allocation2 + $0x190] sm:$0xff] %vm940, %v926
      %992 = vst.msk [vmem:[#allocation2 + $0x198] sm:$0xff] %vm940, %v927
      %993 = vst.msk [vmem:[#allocation2 + $0x1a0] sm:$0xff] %vm940, %v928
      %994 = vst.msk [vmem:[#allocation2 + $0x1a8] sm:$0xff] %vm940, %v929
      %995 = vst.msk [vmem:[#allocation2 + $0x1b0] sm:$0xff] %vm940, %v930
      %996 = vst.msk [vmem:[#allocation2 + $0x1b8] sm:$0xff] %vm940, %v931
      %997 = vst.msk [vmem:[#allocation2 + $0x1c0] sm:$0xff] %vm940, %v932
      %998 = vst.msk [vmem:[#allocation2 + $0x1c8] sm:$0xff] %vm940, %v933
      %999 = vst.msk [vmem:[#allocation2 + $0x1d0] sm:$0xff] %vm940, %v934
      %1000 = vst.msk [vmem:[#allocation2 + $0x1d8] sm:$0xff] %vm940, %v935
      %1001 = vst.msk [vmem:[#allocation2 + $0x1e0] sm:$0xff] %vm940, %v936
      %1002 = vst.msk [vmem:[#allocation2 + $0x1e8] sm:$0xff] %vm940, %v937
      %1003 = vst.msk [vmem:[#allocation2 + $0x1f0] sm:$0xff] %vm940, %v938
      %1004 = vst.msk [vmem:[#allocation2 + $0x1f8] sm:$0xff] %vm940, %v939
      %p1005 = scmp.eq.s32.totalorder %s20, 8
      // Predicated region
      $region41: #{tpu_custom_call.1} parent=35 // pred_check
        %p1006 = pneg %p1005
      $region42: #{tpu_custom_call.1} parent=35 // pred_check_branch
        %1008 = sbr.rel (%p1006) target = $region44
      $region43: #{tpu_custom_call.1} parent=35 // pred_region
        %v1009 = vld [vmem:[#allocation2] sm:$0xff]
        %v1010 = vld [vmem:[#allocation2 + $0x8] sm:$0xff]
        %v1011 = vld [vmem:[#allocation2 + $0x10] sm:$0xff]
        %v1012 = vld [vmem:[#allocation2 + $0x18] sm:$0xff]
        %v1013 = vld [vmem:[#allocation2 + $0x20] sm:$0xff]
        %v1014 = vld [vmem:[#allocation2 + $0x28] sm:$0xff]
        %v1015 = vld [vmem:[#allocation2 + $0x30] sm:$0xff]
        %v1016 = vld [vmem:[#allocation2 + $0x38] sm:$0xff]
        %v1017 = vld [vmem:[#allocation2 + $0x40] sm:$0xff]
        %v1018 = vld [vmem:[#allocation2 + $0x48] sm:$0xff]
        %v1019 = vld [vmem:[#allocation2 + $0x50] sm:$0xff]
        %v1020 = vld [vmem:[#allocation2 + $0x58] sm:$0xff]
        %v1021 = vld [vmem:[#allocation2 + $0x60] sm:$0xff]
        %v1022 = vld [vmem:[#allocation2 + $0x68] sm:$0xff]
        %v1023 = vld [vmem:[#allocation2 + $0x70] sm:$0xff]
        %v1024 = vld [vmem:[#allocation2 + $0x78] sm:$0xff]
        %v1025 = vld [vmem:[#allocation2 + $0x80] sm:$0xff]
        %v1026 = vld [vmem:[#allocation2 + $0x88] sm:$0xff]
        %v1027 = vld [vmem:[#allocation2 + $0x90] sm:$0xff]
        %v1028 = vld [vmem:[#allocation2 + $0x98] sm:$0xff]
        %v1029 = vld [vmem:[#allocation2 + $0xa0] sm:$0xff]
        %v1030 = vld [vmem:[#allocation2 + $0xa8] sm:$0xff]
        %v1031 = vld [vmem:[#allocation2 + $0xb0] sm:$0xff]
        %v1032 = vld [vmem:[#allocation2 + $0xb8] sm:$0xff]
        %v1033 = vld [vmem:[#allocation2 + $0xc0] sm:$0xff]
        %v1034 = vld [vmem:[#allocation2 + $0xc8] sm:$0xff]
        %v1035 = vld [vmem:[#allocation2 + $0xd0] sm:$0xff]
        %v1036 = vld [vmem:[#allocation2 + $0xd8] sm:$0xff]
        %v1037 = vld [vmem:[#allocation2 + $0xe0] sm:$0xff]
        %v1038 = vld [vmem:[#allocation2 + $0xe8] sm:$0xff]
        %v1039 = vld [vmem:[#allocation2 + $0xf0] sm:$0xff]
        %v1040 = vld [vmem:[#allocation2 + $0xf8] sm:$0xff]
        %v1041 = vld [vmem:[#allocation2 + $0x100] sm:$0xff]
        %v1042 = vld [vmem:[#allocation2 + $0x108] sm:$0xff]
        %v1043 = vld [vmem:[#allocation2 + $0x110] sm:$0xff]
        %v1044 = vld [vmem:[#allocation2 + $0x118] sm:$0xff]
        %v1045 = vld [vmem:[#allocation2 + $0x120] sm:$0xff]
        %v1046 = vld [vmem:[#allocation2 + $0x128] sm:$0xff]
        %v1047 = vld [vmem:[#allocation2 + $0x130] sm:$0xff]
        %v1048 = vld [vmem:[#allocation2 + $0x138] sm:$0xff]
        %v1049 = vld [vmem:[#allocation2 + $0x140] sm:$0xff]
        %v1050 = vld [vmem:[#allocation2 + $0x148] sm:$0xff]
        %v1051 = vld [vmem:[#allocation2 + $0x150] sm:$0xff]
        %v1052 = vld [vmem:[#allocation2 + $0x158] sm:$0xff]
        %v1053 = vld [vmem:[#allocation2 + $0x160] sm:$0xff]
        %v1054 = vld [vmem:[#allocation2 + $0x168] sm:$0xff]
        %v1055 = vld [vmem:[#allocation2 + $0x170] sm:$0xff]
        %v1056 = vld [vmem:[#allocation2 + $0x178] sm:$0xff]
        %v1057 = vld [vmem:[#allocation2 + $0x180] sm:$0xff]
        %v1058 = vld [vmem:[#allocation2 + $0x188] sm:$0xff]
        %v1059 = vld [vmem:[#allocation2 + $0x190] sm:$0xff]
        %v1060 = vld [vmem:[#allocation2 + $0x198] sm:$0xff]
        %v1061 = vld [vmem:[#allocation2 + $0x1a0] sm:$0xff]
        %v1062 = vld [vmem:[#allocation2 + $0x1a8] sm:$0xff]
        %v1063 = vld [vmem:[#allocation2 + $0x1b0] sm:$0xff]
        %v1064 = vld [vmem:[#allocation2 + $0x1b8] sm:$0xff]
        %v1065 = vld [vmem:[#allocation2 + $0x1c0] sm:$0xff]
        %v1066 = vld [vmem:[#allocation2 + $0x1c8] sm:$0xff]
        %v1067 = vld [vmem:[#allocation2 + $0x1d0] sm:$0xff]
        %v1068 = vld [vmem:[#allocation2 + $0x1d8] sm:$0xff]
        %v1069 = vld [vmem:[#allocation2 + $0x1e0] sm:$0xff]
        %v1070 = vld [vmem:[#allocation2 + $0x1e8] sm:$0xff]
        %v1071 = vld [vmem:[#allocation2 + $0x1f0] sm:$0xff]
        %v1072 = vld [vmem:[#allocation2 + $0x1f8] sm:$0xff]
        %v1073 = vld [vmem:[%s2] sm:$0x1]
        %v1075 = vperm.slane %v1073, 0
        %v1077 = vmul.f32 %v1009, %v1075
        %v1078 = vmul.f32 %v1010, %v1075
        %v1079 = vmul.f32 %v1011, %v1075
        %v1080 = vmul.f32 %v1012, %v1075
        %v1081 = vmul.f32 %v1013, %v1075
        %v1082 = vmul.f32 %v1014, %v1075
        %v1083 = vmul.f32 %v1015, %v1075
        %v1084 = vmul.f32 %v1016, %v1075
        %v1085 = vmul.f32 %v1017, %v1075
        %v1086 = vmul.f32 %v1018, %v1075
        %v1087 = vmul.f32 %v1019, %v1075
        %v1088 = vmul.f32 %v1020, %v1075
        %v1089 = vmul.f32 %v1021, %v1075
        %v1090 = vmul.f32 %v1022, %v1075
        %v1091 = vmul.f32 %v1023, %v1075
        %v1092 = vmul.f32 %v1024, %v1075
        %v1093 = vmul.f32 %v1025, %v1075
        %v1094 = vmul.f32 %v1026, %v1075
        %v1095 = vmul.f32 %v1027, %v1075
        %v1096 = vmul.f32 %v1028, %v1075
        %v1097 = vmul.f32 %v1029, %v1075
        %v1098 = vmul.f32 %v1030, %v1075
        %v1099 = vmul.f32 %v1031, %v1075
        %v1100 = vmul.f32 %v1032, %v1075
        %v1101 = vmul.f32 %v1033, %v1075
        %v1102 = vmul.f32 %v1034, %v1075
        %v1103 = vmul.f32 %v1035, %v1075
        %v1104 = vmul.f32 %v1036, %v1075
        %v1105 = vmul.f32 %v1037, %v1075
        %v1106 = vmul.f32 %v1038, %v1075
        %v1107 = vmul.f32 %v1039, %v1075
        %v1108 = vmul.f32 %v1040, %v1075
        %v1109 = vmul.f32 %v1041, %v1075
        %v1110 = vmul.f32 %v1042, %v1075
        %v1111 = vmul.f32 %v1043, %v1075
        %v1112 = vmul.f32 %v1044, %v1075
        %v1113 = vmul.f32 %v1045, %v1075
        %v1114 = vmul.f32 %v1046, %v1075
        %v1115 = vmul.f32 %v1047, %v1075
        %v1116 = vmul.f32 %v1048, %v1075
        %v1117 = vmul.f32 %v1049, %v1075
        %v1118 = vmul.f32 %v1050, %v1075
        %v1119 = vmul.f32 %v1051, %v1075
        %v1120 = vmul.f32 %v1052, %v1075
        %v1121 = vmul.f32 %v1053, %v1075
        %v1122 = vmul.f32 %v1054, %v1075
        %v1123 = vmul.f32 %v1055, %v1075
        %v1124 = vmul.f32 %v1056, %v1075
        %v1125 = vmul.f32 %v1057, %v1075
        %v1126 = vmul.f32 %v1058, %v1075
        %v1127 = vmul.f32 %v1059, %v1075
        %v1128 = vmul.f32 %v1060, %v1075
        %v1129 = vmul.f32 %v1061, %v1075
        %v1130 = vmul.f32 %v1062, %v1075
        %v1131 = vmul.f32 %v1063, %v1075
        %v1132 = vmul.f32 %v1064, %v1075
        %v1133 = vmul.f32 %v1065, %v1075
        %v1134 = vmul.f32 %v1066, %v1075
        %v1135 = vmul.f32 %v1067, %v1075
        %v1136 = vmul.f32 %v1068, %v1075
        %v1137 = vmul.f32 %v1069, %v1075
        %v1138 = vmul.f32 %v1070, %v1075
        %v1139 = vmul.f32 %v1071, %v1075
        %v1140 = vmul.f32 %v1072, %v1075
        %v1141 = vld [vmem:[%s3] sm:$0x1]
        %v1143 = vperm.slane %v1141, 0
        %v1145 = vadd.f32 %v1077, %v1143
        %v1146 = vadd.f32 %v1078, %v1143
        %v1147 = vadd.f32 %v1079, %v1143
        %v1148 = vadd.f32 %v1080, %v1143
        %v1149 = vadd.f32 %v1081, %v1143
        %v1150 = vadd.f32 %v1082, %v1143
        %v1151 = vadd.f32 %v1083, %v1143
        %v1152 = vadd.f32 %v1084, %v1143
        %v1153 = vadd.f32 %v1085, %v1143
        %v1154 = vadd.f32 %v1086, %v1143
        %v1155 = vadd.f32 %v1087, %v1143
        %v1156 = vadd.f32 %v1088, %v1143
        %v1157 = vadd.f32 %v1089, %v1143
        %v1158 = vadd.f32 %v1090, %v1143
        %v1159 = vadd.f32 %v1091, %v1143
        %v1160 = vadd.f32 %v1092, %v1143
        %v1161 = vadd.f32 %v1093, %v1143
        %v1162 = vadd.f32 %v1094, %v1143
        %v1163 = vadd.f32 %v1095, %v1143
        %v1164 = vadd.f32 %v1096, %v1143
        %v1165 = vadd.f32 %v1097, %v1143
        %v1166 = vadd.f32 %v1098, %v1143
        %v1167 = vadd.f32 %v1099, %v1143
        %v1168 = vadd.f32 %v1100, %v1143
        %v1169 = vadd.f32 %v1101, %v1143
        %v1170 = vadd.f32 %v1102, %v1143
        %v1171 = vadd.f32 %v1103, %v1143
        %v1172 = vadd.f32 %v1104, %v1143
        %v1173 = vadd.f32 %v1105, %v1143
        %v1174 = vadd.f32 %v1106, %v1143
        %v1175 = vadd.f32 %v1107, %v1143
        %v1176 = vadd.f32 %v1108, %v1143
        %v1177 = vadd.f32 %v1109, %v1143
        %v1178 = vadd.f32 %v1110, %v1143
        %v1179 = vadd.f32 %v1111, %v1143
        %v1180 = vadd.f32 %v1112, %v1143
        %v1181 = vadd.f32 %v1113, %v1143
        %v1182 = vadd.f32 %v1114, %v1143
        %v1183 = vadd.f32 %v1115, %v1143
        %v1184 = vadd.f32 %v1116, %v1143
        %v1185 = vadd.f32 %v1117, %v1143
        %v1186 = vadd.f32 %v1118, %v1143
        %v1187 = vadd.f32 %v1119, %v1143
        %v1188 = vadd.f32 %v1120, %v1143
        %v1189 = vadd.f32 %v1121, %v1143
        %v1190 = vadd.f32 %v1122, %v1143
        %v1191 = vadd.f32 %v1123, %v1143
        %v1192 = vadd.f32 %v1124, %v1143
        %v1193 = vadd.f32 %v1125, %v1143
        %v1194 = vadd.f32 %v1126, %v1143
        %v1195 = vadd.f32 %v1127, %v1143
        %v1196 = vadd.f32 %v1128, %v1143
        %v1197 = vadd.f32 %v1129, %v1143
        %v1198 = vadd.f32 %v1130, %v1143
        %v1199 = vadd.f32 %v1131, %v1143
        %v1200 = vadd.f32 %v1132, %v1143
        %v1201 = vadd.f32 %v1133, %v1143
        %v1202 = vadd.f32 %v1134, %v1143
        %v1203 = vadd.f32 %v1135, %v1143
        %v1204 = vadd.f32 %v1136, %v1143
        %v1205 = vadd.f32 %v1137, %v1143
        %v1206 = vadd.f32 %v1138, %v1143
        %v1207 = vadd.f32 %v1139, %v1143
        %v1208 = vadd.f32 %v1140, %v1143
        %v1209 = vadd.f32 %v1145, 3.0
        %v1210 = vadd.f32 %v1146, 3.0
        %v1211 = vadd.f32 %v1147, 3.0
        %v1212 = vadd.f32 %v1148, 3.0
        %v1213 = vadd.f32 %v1149, 3.0
        %v1214 = vadd.f32 %v1150, 3.0
        %v1215 = vadd.f32 %v1151, 3.0
        %v1216 = vadd.f32 %v1152, 3.0
        %v1217 = vadd.f32 %v1153, 3.0
        %v1218 = vadd.f32 %v1154, 3.0
        %v1219 = vadd.f32 %v1155, 3.0
        %v1220 = vadd.f32 %v1156, 3.0
        %v1221 = vadd.f32 %v1157, 3.0
        %v1222 = vadd.f32 %v1158, 3.0
        %v1223 = vadd.f32 %v1159, 3.0
        %v1224 = vadd.f32 %v1160, 3.0
        %v1225 = vadd.f32 %v1161, 3.0
        %v1226 = vadd.f32 %v1162, 3.0
        %v1227 = vadd.f32 %v1163, 3.0
        %v1228 = vadd.f32 %v1164, 3.0
        %v1229 = vadd.f32 %v1165, 3.0
        %v1230 = vadd.f32 %v1166, 3.0
        %v1231 = vadd.f32 %v1167, 3.0
        %v1232 = vadd.f32 %v1168, 3.0
        %v1233 = vadd.f32 %v1169, 3.0
        %v1234 = vadd.f32 %v1170, 3.0
        %v1235 = vadd.f32 %v1171, 3.0
        %v1236 = vadd.f32 %v1172, 3.0
        %v1237 = vadd.f32 %v1173, 3.0
        %v1238 = vadd.f32 %v1174, 3.0
        %v1239 = vadd.f32 %v1175, 3.0
        %v1240 = vadd.f32 %v1176, 3.0
        %v1241 = vadd.f32 %v1177, 3.0
        %v1242 = vadd.f32 %v1178, 3.0
        %v1243 = vadd.f32 %v1179, 3.0
        %v1244 = vadd.f32 %v1180, 3.0
        %v1245 = vadd.f32 %v1181, 3.0
        %v1246 = vadd.f32 %v1182, 3.0
        %v1247 = vadd.f32 %v1183, 3.0
        %v1248 = vadd.f32 %v1184, 3.0
        %v1249 = vadd.f32 %v1185, 3.0
        %v1250 = vadd.f32 %v1186, 3.0
        %v1251 = vadd.f32 %v1187, 3.0
        %v1252 = vadd.f32 %v1188, 3.0
        %v1253 = vadd.f32 %v1189, 3.0
        %v1254 = vadd.f32 %v1190, 3.0
        %v1255 = vadd.f32 %v1191, 3.0
        %v1256 = vadd.f32 %v1192, 3.0
        %v1257 = vadd.f32 %v1193, 3.0
        %v1258 = vadd.f32 %v1194, 3.0
        %v1259 = vadd.f32 %v1195, 3.0
        %v1260 = vadd.f32 %v1196, 3.0
        %v1261 = vadd.f32 %v1197, 3.0
        %v1262 = vadd.f32 %v1198, 3.0
        %v1263 = vadd.f32 %v1199, 3.0
        %v1264 = vadd.f32 %v1200, 3.0
        %v1265 = vadd.f32 %v1201, 3.0
        %v1266 = vadd.f32 %v1202, 3.0
        %v1267 = vadd.f32 %v1203, 3.0
        %v1268 = vadd.f32 %v1204, 3.0
        %v1269 = vadd.f32 %v1205, 3.0
        %v1270 = vadd.f32 %v1206, 3.0
        %v1271 = vadd.f32 %v1207, 3.0
        %v1272 = vadd.f32 %v1208, 3.0
        %v1273 = vmax.f32 %v1209, 0.0
        %v1274 = vmax.f32 %v1210, 0.0
        %v1275 = vmax.f32 %v1211, 0.0
        %v1276 = vmax.f32 %v1212, 0.0
        %v1277 = vmax.f32 %v1213, 0.0
        %v1278 = vmax.f32 %v1214, 0.0
        %v1279 = vmax.f32 %v1215, 0.0
        %v1280 = vmax.f32 %v1216, 0.0
        %v1281 = vmax.f32 %v1217, 0.0
        %v1282 = vmax.f32 %v1218, 0.0
        %v1283 = vmax.f32 %v1219, 0.0
        %v1284 = vmax.f32 %v1220, 0.0
        %v1285 = vmax.f32 %v1221, 0.0
        %v1286 = vmax.f32 %v1222, 0.0
        %v1287 = vmax.f32 %v1223, 0.0
        %v1288 = vmax.f32 %v1224, 0.0
        %v1289 = vmax.f32 %v1225, 0.0
        %v1290 = vmax.f32 %v1226, 0.0
        %v1291 = vmax.f32 %v1227, 0.0
        %v1292 = vmax.f32 %v1228, 0.0
        %v1293 = vmax.f32 %v1229, 0.0
        %v1294 = vmax.f32 %v1230, 0.0
        %v1295 = vmax.f32 %v1231, 0.0
        %v1296 = vmax.f32 %v1232, 0.0
        %v1297 = vmax.f32 %v1233, 0.0
        %v1298 = vmax.f32 %v1234, 0.0
        %v1299 = vmax.f32 %v1235, 0.0
        %v1300 = vmax.f32 %v1236, 0.0
        %v1301 = vmax.f32 %v1237, 0.0
        %v1302 = vmax.f32 %v1238, 0.0
        %v1303 = vmax.f32 %v1239, 0.0
        %v1304 = vmax.f32 %v1240, 0.0
        %v1305 = vmax.f32 %v1241, 0.0
        %v1306 = vmax.f32 %v1242, 0.0
        %v1307 = vmax.f32 %v1243, 0.0
        %v1308 = vmax.f32 %v1244, 0.0
        %v1309 = vmax.f32 %v1245, 0.0
        %v1310 = vmax.f32 %v1246, 0.0
        %v1311 = vmax.f32 %v1247, 0.0
        %v1312 = vmax.f32 %v1248, 0.0
        %v1313 = vmax.f32 %v1249, 0.0
        %v1314 = vmax.f32 %v1250, 0.0
        %v1315 = vmax.f32 %v1251, 0.0
        %v1316 = vmax.f32 %v1252, 0.0
        %v1317 = vmax.f32 %v1253, 0.0
        %v1318 = vmax.f32 %v1254, 0.0
        %v1319 = vmax.f32 %v1255, 0.0
        %v1320 = vmax.f32 %v1256, 0.0
        %v1321 = vmax.f32 %v1257, 0.0
        %v1322 = vmax.f32 %v1258, 0.0
        %v1323 = vmax.f32 %v1259, 0.0
        %v1324 = vmax.f32 %v1260, 0.0
        %v1325 = vmax.f32 %v1261, 0.0
        %v1326 = vmax.f32 %v1262, 0.0
        %v1327 = vmax.f32 %v1263, 0.0
        %v1328 = vmax.f32 %v1264, 0.0
        %v1329 = vmax.f32 %v1265, 0.0
        %v1330 = vmax.f32 %v1266, 0.0
        %v1331 = vmax.f32 %v1267, 0.0
        %v1332 = vmax.f32 %v1268, 0.0
        %v1333 = vmax.f32 %v1269, 0.0
        %v1334 = vmax.f32 %v1270, 0.0
        %v1335 = vmax.f32 %v1271, 0.0
        %v1336 = vmax.f32 %v1272, 0.0
        %v1337 = vmin.f32 %v1273, 6.0
        %v1338 = vmin.f32 %v1274, 6.0
        %v1339 = vmin.f32 %v1275, 6.0
        %v1340 = vmin.f32 %v1276, 6.0
        %v1341 = vmin.f32 %v1277, 6.0
        %v1342 = vmin.f32 %v1278, 6.0
        %v1343 = vmin.f32 %v1279, 6.0
        %v1344 = vmin.f32 %v1280, 6.0
        %v1345 = vmin.f32 %v1281, 6.0
        %v1346 = vmin.f32 %v1282, 6.0
        %v1347 = vmin.f32 %v1283, 6.0
        %v1348 = vmin.f32 %v1284, 6.0
        %v1349 = vmin.f32 %v1285, 6.0
        %v1350 = vmin.f32 %v1286, 6.0
        %v1351 = vmin.f32 %v1287, 6.0
        %v1352 = vmin.f32 %v1288, 6.0
        %v1353 = vmin.f32 %v1289, 6.0
        %v1354 = vmin.f32 %v1290, 6.0
        %v1355 = vmin.f32 %v1291, 6.0
        %v1356 = vmin.f32 %v1292, 6.0
        %v1357 = vmin.f32 %v1293, 6.0
        %v1358 = vmin.f32 %v1294, 6.0
        %v1359 = vmin.f32 %v1295, 6.0
        %v1360 = vmin.f32 %v1296, 6.0
        %v1361 = vmin.f32 %v1297, 6.0
        %v1362 = vmin.f32 %v1298, 6.0
        %v1363 = vmin.f32 %v1299, 6.0
        %v1364 = vmin.f32 %v1300, 6.0
        %v1365 = vmin.f32 %v1301, 6.0
        %v1366 = vmin.f32 %v1302, 6.0
        %v1367 = vmin.f32 %v1303, 6.0
        %v1368 = vmin.f32 %v1304, 6.0
        %v1369 = vmin.f32 %v1305, 6.0
        %v1370 = vmin.f32 %v1306, 6.0
        %v1371 = vmin.f32 %v1307, 6.0
        %v1372 = vmin.f32 %v1308, 6.0
        %v1373 = vmin.f32 %v1309, 6.0
        %v1374 = vmin.f32 %v1310, 6.0
        %v1375 = vmin.f32 %v1311, 6.0
        %v1376 = vmin.f32 %v1312, 6.0
        %v1377 = vmin.f32 %v1313, 6.0
        %v1378 = vmin.f32 %v1314, 6.0
        %v1379 = vmin.f32 %v1315, 6.0
        %v1380 = vmin.f32 %v1316, 6.0
        %v1381 = vmin.f32 %v1317, 6.0
        %v1382 = vmin.f32 %v1318, 6.0
        %v1383 = vmin.f32 %v1319, 6.0
        %v1384 = vmin.f32 %v1320, 6.0
        %v1385 = vmin.f32 %v1321, 6.0
        %v1386 = vmin.f32 %v1322, 6.0
        %v1387 = vmin.f32 %v1323, 6.0
        %v1388 = vmin.f32 %v1324, 6.0
        %v1389 = vmin.f32 %v1325, 6.0
        %v1390 = vmin.f32 %v1326, 6.0
        %v1391 = vmin.f32 %v1327, 6.0
        %v1392 = vmin.f32 %v1328, 6.0
        %v1393 = vmin.f32 %v1329, 6.0
        %v1394 = vmin.f32 %v1330, 6.0
        %v1395 = vmin.f32 %v1331, 6.0
        %v1396 = vmin.f32 %v1332, 6.0
        %v1397 = vmin.f32 %v1333, 6.0
        %v1398 = vmin.f32 %v1334, 6.0
        %v1399 = vmin.f32 %v1335, 6.0
        %v1400 = vmin.f32 %v1336, 6.0
        %v1401 = vmul.f32 %v1145, %v1337
        %v1402 = vmul.f32 %v1146, %v1338
        %v1403 = vmul.f32 %v1147, %v1339
        %v1404 = vmul.f32 %v1148, %v1340
        %v1405 = vmul.f32 %v1149, %v1341
        %v1406 = vmul.f32 %v1150, %v1342
        %v1407 = vmul.f32 %v1151, %v1343
        %v1408 = vmul.f32 %v1152, %v1344
        %v1409 = vmul.f32 %v1153, %v1345
        %v1410 = vmul.f32 %v1154, %v1346
        %v1411 = vmul.f32 %v1155, %v1347
        %v1412 = vmul.f32 %v1156, %v1348
        %v1413 = vmul.f32 %v1157, %v1349
        %v1414 = vmul.f32 %v1158, %v1350
        %v1415 = vmul.f32 %v1159, %v1351
        %v1416 = vmul.f32 %v1160, %v1352
        %v1417 = vmul.f32 %v1161, %v1353
        %v1418 = vmul.f32 %v1162, %v1354
        %v1419 = vmul.f32 %v1163, %v1355
        %v1420 = vmul.f32 %v1164, %v1356
        %v1421 = vmul.f32 %v1165, %v1357
        %v1422 = vmul.f32 %v1166, %v1358
        %v1423 = vmul.f32 %v1167, %v1359
        %v1424 = vmul.f32 %v1168, %v1360
        %v1425 = vmul.f32 %v1169, %v1361
        %v1426 = vmul.f32 %v1170, %v1362
        %v1427 = vmul.f32 %v1171, %v1363
        %v1428 = vmul.f32 %v1172, %v1364
        %v1429 = vmul.f32 %v1173, %v1365
        %v1430 = vmul.f32 %v1174, %v1366
        %v1431 = vmul.f32 %v1175, %v1367
        %v1432 = vmul.f32 %v1176, %v1368
        %v1433 = vmul.f32 %v1177, %v1369
        %v1434 = vmul.f32 %v1178, %v1370
        %v1435 = vmul.f32 %v1179, %v1371
        %v1436 = vmul.f32 %v1180, %v1372
        %v1437 = vmul.f32 %v1181, %v1373
        %v1438 = vmul.f32 %v1182, %v1374
        %v1439 = vmul.f32 %v1183, %v1375
        %v1440 = vmul.f32 %v1184, %v1376
        %v1441 = vmul.f32 %v1185, %v1377
        %v1442 = vmul.f32 %v1186, %v1378
        %v1443 = vmul.f32 %v1187, %v1379
        %v1444 = vmul.f32 %v1188, %v1380
        %v1445 = vmul.f32 %v1189, %v1381
        %v1446 = vmul.f32 %v1190, %v1382
        %v1447 = vmul.f32 %v1191, %v1383
        %v1448 = vmul.f32 %v1192, %v1384
        %v1449 = vmul.f32 %v1193, %v1385
        %v1450 = vmul.f32 %v1194, %v1386
        %v1451 = vmul.f32 %v1195, %v1387
        %v1452 = vmul.f32 %v1196, %v1388
        %v1453 = vmul.f32 %v1197, %v1389
        %v1454 = vmul.f32 %v1198, %v1390
        %v1455 = vmul.f32 %v1199, %v1391
        %v1456 = vmul.f32 %v1200, %v1392
        %v1457 = vmul.f32 %v1201, %v1393
        %v1458 = vmul.f32 %v1202, %v1394
        %v1459 = vmul.f32 %v1203, %v1395
        %v1460 = vmul.f32 %v1204, %v1396
        %v1461 = vmul.f32 %v1205, %v1397
        %v1462 = vmul.f32 %v1206, %v1398
        %v1463 = vmul.f32 %v1207, %v1399
        %v1464 = vmul.f32 %v1208, %v1400
        %v1465 = vmul.f32 %v1401, 0.16666667
        %v1466 = vmul.f32 %v1402, 0.16666667
        %v1467 = vmul.f32 %v1403, 0.16666667
        %v1468 = vmul.f32 %v1404, 0.16666667
        %v1469 = vmul.f32 %v1405, 0.16666667
        %v1470 = vmul.f32 %v1406, 0.16666667
        %v1471 = vmul.f32 %v1407, 0.16666667
        %v1472 = vmul.f32 %v1408, 0.16666667
        %v1473 = vmul.f32 %v1409, 0.16666667
        %v1474 = vmul.f32 %v1410, 0.16666667
        %v1475 = vmul.f32 %v1411, 0.16666667
        %v1476 = vmul.f32 %v1412, 0.16666667
        %v1477 = vmul.f32 %v1413, 0.16666667
        %v1478 = vmul.f32 %v1414, 0.16666667
        %v1479 = vmul.f32 %v1415, 0.16666667
        %v1480 = vmul.f32 %v1416, 0.16666667
        %v1481 = vmul.f32 %v1417, 0.16666667
        %v1482 = vmul.f32 %v1418, 0.16666667
        %v1483 = vmul.f32 %v1419, 0.16666667
        %v1484 = vmul.f32 %v1420, 0.16666667
        %v1485 = vmul.f32 %v1421, 0.16666667
        %v1486 = vmul.f32 %v1422, 0.16666667
        %v1487 = vmul.f32 %v1423, 0.16666667
        %v1488 = vmul.f32 %v1424, 0.16666667
        %v1489 = vmul.f32 %v1425, 0.16666667
        %v1490 = vmul.f32 %v1426, 0.16666667
        %v1491 = vmul.f32 %v1427, 0.16666667
        %v1492 = vmul.f32 %v1428, 0.16666667
        %v1493 = vmul.f32 %v1429, 0.16666667
        %v1494 = vmul.f32 %v1430, 0.16666667
        %v1495 = vmul.f32 %v1431, 0.16666667
        %v1496 = vmul.f32 %v1432, 0.16666667
        %v1497 = vmul.f32 %v1433, 0.16666667
        %v1498 = vmul.f32 %v1434, 0.16666667
        %v1499 = vmul.f32 %v1435, 0.16666667
        %v1500 = vmul.f32 %v1436, 0.16666667
        %v1501 = vmul.f32 %v1437, 0.16666667
        %v1502 = vmul.f32 %v1438, 0.16666667
        %v1503 = vmul.f32 %v1439, 0.16666667
        %v1504 = vmul.f32 %v1440, 0.16666667
        %v1505 = vmul.f32 %v1441, 0.16666667
        %v1506 = vmul.f32 %v1442, 0.16666667
        %v1507 = vmul.f32 %v1443, 0.16666667
        %v1508 = vmul.f32 %v1444, 0.16666667
        %v1509 = vmul.f32 %v1445, 0.16666667
        %v1510 = vmul.f32 %v1446, 0.16666667
        %v1511 = vmul.f32 %v1447, 0.16666667
        %v1512 = vmul.f32 %v1448, 0.16666667
        %v1513 = vmul.f32 %v1449, 0.16666667
        %v1514 = vmul.f32 %v1450, 0.16666667
        %v1515 = vmul.f32 %v1451, 0.16666667
        %v1516 = vmul.f32 %v1452, 0.16666667
        %v1517 = vmul.f32 %v1453, 0.16666667
        %v1518 = vmul.f32 %v1454, 0.16666667
        %v1519 = vmul.f32 %v1455, 0.16666667
        %v1520 = vmul.f32 %v1456, 0.16666667
        %v1521 = vmul.f32 %v1457, 0.16666667
        %v1522 = vmul.f32 %v1458, 0.16666667
        %v1523 = vmul.f32 %v1459, 0.16666667
        %v1524 = vmul.f32 %v1460, 0.16666667
        %v1525 = vmul.f32 %v1461, 0.16666667
        %v1526 = vmul.f32 %v1462, 0.16666667
        %v1527 = vmul.f32 %v1463, 0.16666667
        %v1528 = vmul.f32 %v1464, 0.16666667
        %1529 = vst.msk [vmem:[%s242] sm:$0xff] %vm940, %v1465
        %1530 = vst.msk [vmem:[%s242 + $0x8] sm:$0xff] %vm940, %v1466
        %1531 = vst.msk [vmem:[%s242 + $0x10] sm:$0xff] %vm940, %v1467
        %1532 = vst.msk [vmem:[%s242 + $0x18] sm:$0xff] %vm940, %v1468
        %1533 = vst.msk [vmem:[%s242 + $0x20] sm:$0xff] %vm940, %v1469
        %1534 = vst.msk [vmem:[%s242 + $0x28] sm:$0xff] %vm940, %v1470
        %1535 = vst.msk [vmem:[%s242 + $0x30] sm:$0xff] %vm940, %v1471
        %1536 = vst.msk [vmem:[%s242 + $0x38] sm:$0xff] %vm940, %v1472
        %1537 = vst.msk [vmem:[%s242 + $0x40] sm:$0xff] %vm940, %v1473
        %1538 = vst.msk [vmem:[%s242 + $0x48] sm:$0xff] %vm940, %v1474
        %1539 = vst.msk [vmem:[%s242 + $0x50] sm:$0xff] %vm940, %v1475
        %1540 = vst.msk [vmem:[%s242 + $0x58] sm:$0xff] %vm940, %v1476
        %1541 = vst.msk [vmem:[%s242 + $0x60] sm:$0xff] %vm940, %v1477
        %1542 = vst.msk [vmem:[%s242 + $0x68] sm:$0xff] %vm940, %v1478
        %1543 = vst.msk [vmem:[%s242 + $0x70] sm:$0xff] %vm940, %v1479
        %1544 = vst.msk [vmem:[%s242 + $0x78] sm:$0xff] %vm940, %v1480
        %1545 = vst.msk [vmem:[%s242 + $0x80] sm:$0xff] %vm940, %v1481
        %1546 = vst.msk [vmem:[%s242 + $0x88] sm:$0xff] %vm940, %v1482
        %1547 = vst.msk [vmem:[%s242 + $0x90] sm:$0xff] %vm940, %v1483
        %1548 = vst.msk [vmem:[%s242 + $0x98] sm:$0xff] %vm940, %v1484
        %1549 = vst.msk [vmem:[%s242 + $0xa0] sm:$0xff] %vm940, %v1485
        %1550 = vst.msk [vmem:[%s242 + $0xa8] sm:$0xff] %vm940, %v1486
        %1551 = vst.msk [vmem:[%s242 + $0xb0] sm:$0xff] %vm940, %v1487
        %1552 = vst.msk [vmem:[%s242 + $0xb8] sm:$0xff] %vm940, %v1488
        %1553 = vst.msk [vmem:[%s242 + $0xc0] sm:$0xff] %vm940, %v1489
        %1554 = vst.msk [vmem:[%s242 + $0xc8] sm:$0xff] %vm940, %v1490
        %1555 = vst.msk [vmem:[%s242 + $0xd0] sm:$0xff] %vm940, %v1491
        %1556 = vst.msk [vmem:[%s242 + $0xd8] sm:$0xff] %vm940, %v1492
        %1557 = vst.msk [vmem:[%s242 + $0xe0] sm:$0xff] %vm940, %v1493
        %1558 = vst.msk [vmem:[%s242 + $0xe8] sm:$0xff] %vm940, %v1494
        %1559 = vst.msk [vmem:[%s242 + $0xf0] sm:$0xff] %vm940, %v1495
        %1560 = vst.msk [vmem:[%s242 + $0xf8] sm:$0xff] %vm940, %v1496
        %1561 = vst.msk [vmem:[%s242 + $0x100] sm:$0xff] %vm940, %v1497
        %1562 = vst.msk [vmem:[%s242 + $0x108] sm:$0xff] %vm940, %v1498
        %1563 = vst.msk [vmem:[%s242 + $0x110] sm:$0xff] %vm940, %v1499
        %1564 = vst.msk [vmem:[%s242 + $0x118] sm:$0xff] %vm940, %v1500
        %1565 = vst.msk [vmem:[%s242 + $0x120] sm:$0xff] %vm940, %v1501
        %1566 = vst.msk [vmem:[%s242 + $0x128] sm:$0xff] %vm940, %v1502
        %1567 = vst.msk [vmem:[%s242 + $0x130] sm:$0xff] %vm940, %v1503
        %1568 = vst.msk [vmem:[%s242 + $0x138] sm:$0xff] %vm940, %v1504
        %1569 = vst.msk [vmem:[%s242 + $0x140] sm:$0xff] %vm940, %v1505
        %1570 = vst.msk [vmem:[%s242 + $0x148] sm:$0xff] %vm940, %v1506
        %1571 = vst.msk [vmem:[%s242 + $0x150] sm:$0xff] %vm940, %v1507
        %1572 = vst.msk [vmem:[%s242 + $0x158] sm:$0xff] %vm940, %v1508
        %1573 = vst.msk [vmem:[%s242 + $0x160] sm:$0xff] %vm940, %v1509
        %1574 = vst.msk [vmem:[%s242 + $0x168] sm:$0xff] %vm940, %v1510
        %1575 = vst.msk [vmem:[%s242 + $0x170] sm:$0xff] %vm940, %v1511
        %1576 = vst.msk [vmem:[%s242 + $0x178] sm:$0xff] %vm940, %v1512
        %1577 = vst.msk [vmem:[%s242 + $0x180] sm:$0xff] %vm940, %v1513
        %1578 = vst.msk [vmem:[%s242 + $0x188] sm:$0xff] %vm940, %v1514
        %1579 = vst.msk [vmem:[%s242 + $0x190] sm:$0xff] %vm940, %v1515
        %1580 = vst.msk [vmem:[%s242 + $0x198] sm:$0xff] %vm940, %v1516
        %1581 = vst.msk [vmem:[%s242 + $0x1a0] sm:$0xff] %vm940, %v1517
        %1582 = vst.msk [vmem:[%s242 + $0x1a8] sm:$0xff] %vm940, %v1518
        %1583 = vst.msk [vmem:[%s242 + $0x1b0] sm:$0xff] %vm940, %v1519
        %1584 = vst.msk [vmem:[%s242 + $0x1b8] sm:$0xff] %vm940, %v1520
        %1585 = vst.msk [vmem:[%s242 + $0x1c0] sm:$0xff] %vm940, %v1521
        %1586 = vst.msk [vmem:[%s242 + $0x1c8] sm:$0xff] %vm940, %v1522
        %1587 = vst.msk [vmem:[%s242 + $0x1d0] sm:$0xff] %vm940, %v1523
        %1588 = vst.msk [vmem:[%s242 + $0x1d8] sm:$0xff] %vm940, %v1524
        %1589 = vst.msk [vmem:[%s242 + $0x1e0] sm:$0xff] %vm940, %v1525
        %1590 = vst.msk [vmem:[%s242 + $0x1e8] sm:$0xff] %vm940, %v1526
        %1591 = vst.msk [vmem:[%s242 + $0x1f0] sm:$0xff] %vm940, %v1527
        %1592 = vst.msk [vmem:[%s242 + $0x1f8] sm:$0xff] %vm940, %v1528
      $region44: #{tpu_custom_call.1} parent=35 // pred_fallthru
        _
      %s1593 = smul.u32 64, %s19
      %p1594 = scmp.lt.s32.totalorder %s1593, 63
      %s1595 = scalar_select %p1594, %s1593, 63
      %s1596 = smul.addr %s1595, 8
      %s1597 = scalar_lea.vmem %s4, %s1596
      // Predicated region
      $region45: #{tpu_custom_call.1} parent=35 // pred_check
        %p1598 = pneg %p141
      $region46: #{tpu_custom_call.1} parent=35 // pred_check_branch
        %1600 = sbr.rel (%p1598) target = $region48
      $region47: #{tpu_custom_call.1} parent=35 // pred_region
        %s1601 = smul.u32 64, %s19
      $region48: #{tpu_custom_call.1} parent=35 // pred_fallthru
        _
      // Predicated region
      $region49: #{tpu_custom_call.1} parent=35 // pred_check
        %p1602 = pneg %p141
      $region50: #{tpu_custom_call.1} parent=35 // pred_check_branch
        %1604 = sbr.rel (%p1602) target = $region52
      $region51: #{tpu_custom_call.1} parent=35 // pred_region
        %s1605 = smul.u32 64, %s19
        %p1606 = scmp.lt.s32.totalorder %s1605, 63
        %s1607 = scalar_select %p1606, %s1605, 63
        %s1608 = smul.addr %s1607, 8
        %s1609 = scalar_lea.vmem %s4, %s1608
      $region52: #{tpu_custom_call.1} parent=35 // pred_fallthru
        _
    $region36: #{tpu_custom_call.1} parent=5 // pred_fallthru
      _
    %p1610 = scmp.le.s32.totalorder 2, %s10
    // Predicated region
    $region53: #{tpu_custom_call.1} parent=5 // pred_check
      %p1611 = pneg %p1610
    $region54: #{tpu_custom_call.1} parent=5 // pred_check_branch
      %1613 = sbr.rel (%p1611) target = $region56
    $region55: #{tpu_custom_call.1} parent=5 // pred_region
      %s1614 = ssub.s32 %s10, 2
    $region56: #{tpu_custom_call.1} parent=5 // pred_fallthru
      _
  $region6: #{tpu_custom_call.1} parent=0 // loop_footer
    %s14 = sadd.s32 1, %s10
  $region7: #{tpu_custom_call.1} parent=0 // loop_footer_branch
    %9 = sbr.rel target = $region3
  $region8: #{tpu_custom_call.1} parent=0 // loop_exit
    _

</llo_original>
